<compile_context>
chip_gen: v6e
topology: v6e:2x2x1
jax: 0.10.0
libtpu: 0.0.40
codegen_flags: <defaults>
</compile_context>

<pallas_src>
import functools
import math

import jax
import jax.numpy as jnp
from jax.experimental import pallas as pl
from jax.experimental.pallas import tpu as pltpu


# ------------------------------ planning helpers ------------------------------
def _device_kind():
    try:
        return jax.devices()[0].device_kind.lower()
    except Exception:
        return ""


def _is_v7(kind):
    return ("v7" in kind) or ("7x" in kind)


def _num_core_splits(kind):
    # v4 / v5p megacore and v7x have 2 TensorCores per chip.
    if ("v4" in kind) or ("v5p" in kind) or _is_v7(kind):
        return 2
    return 1


def _round_up(x, m):
    return ((x + m - 1) // m) * m


def _vmem_estimate(te, n, h, ew):
    """Rough per-core VMEM footprint (bytes) of one edge-tile grid step."""
    lane = 128
    n_l = _round_up(max(n, 1), lane)
    h_l = _round_up(max(h, 1), lane)
    ew_l = _round_up(ew, lane)
    b = 0
    b += 2 * te * ew_l * 4                    # packed edge data (double-buffered)
    b += te * n_l * (2 + 2 + 4)               # one-hots: row bf16, col bf16, row f32
    b += 4 * te * h_l * 4                     # f32 MLP activations (a few live copies)
    b += 2 * _round_up(n, 8) * h_l * 2        # hwa + hwb bf16 (single-buffered)
    b += _round_up(h, 8) * h_l * 2            # w2 bf16
    b += 6 * 8 * lane * 4                     # small weights (w1c, b2, w3) padded tiles
    b += 2 * 8 * n_l * 4                      # [4, N] partial accumulator block
    b += 2 << 20                              # slack / spill headroom
    return b


def _choose_tile_and_vmem(n, h, ew, e, c, requested, kind):
    if _is_v7(kind):
        phys = 64 << 20
    elif ("v2" in kind) or ("v3" in kind):
        phys = 16 << 20
    else:
        phys = 128 << 20
    limit_cap = phys - phys // 8              # leave headroom for the compiler

    if requested is not None:
        tile = int(requested)
    else:
        small = (kind == "" or ("v5" in kind and "v5p" not in kind)
                 or "v2" in kind or "v3" in kind)
        prefer = 256 if small else 512
        tile = 128
        for t in (prefer, 256, 128):
            if t <= prefer and _vmem_estimate(t, n, h, ew) <= limit_cap:
                tile = t
                break

    # Don't use a tile much larger than the per-core edge count.
    cap = _round_up(max(1, -(-e // c)), 128)
    tile = max(128, min(tile, cap))

    vbytes = _vmem_estimate(tile, n, h, ew)
    vmem_limit = int(min(limit_cap, vbytes + (8 << 20)))
    vmem_limit = max(vmem_limit, min(limit_cap, 32 << 20))
    return tile, vmem_limit


# ---------------------------------- kernel ------------------------------------
def _equiv_update_kernel(edata_ref, hwa_ref, hwb_ref, w1c_ref, w2_ref, b2_ref,
                         w3_ref, acc_ref, *, num_nodes, edges_in_d, use_tanh,
                         coords_range):
    # Packed per-edge column layout (f32 lanes):
    #   [0:2]    row|col as bitcast int32  (padded edges: row = col = 0)
    #   [2:5]    coord_diff * edge_mask    (padded edges: 0)
    #   [5]      valid flag                (padded edges: 0 -> no count / no contribution)
    #   [6:6+De] edge_attr
    step = pl.program_id(1)

    @pl.when(step == 0)
    def _init():
        acc_ref[...] = jnp.zeros_like(acc_ref)

    te = edata_ref.shape[0]
    edata = edata_ref[...]                                      # [TE, EW] f32
    rc = pltpu.bitcast(edata[:, 0:2], jnp.int32)                # [TE, 2]
    rows = rc[:, 0:1]                                           # [TE, 1]
    cols = rc[:, 1:2]                                           # [TE, 1]

    # One-hot gather/scatter matrices (0/1 exact in every dtype): built on the
    # VPU, consumed on the MXU.
    node_iota = jax.lax.broadcasted_iota(jnp.int32, (te, num_nodes), 1)
    oh_row_f32 = (node_iota == rows).astype(jnp.float32)        # f32 copy for the scatter
    oh_row = oh_row_f32.astype(jnp.bfloat16)                    # bf16 for the gather MXU
    oh_col = (node_iota == cols).astype(jnp.bfloat16)

    # Layer 1: weights were pre-applied to h in the wrapper (b1 folded into hwa).
    x = (jnp.dot(oh_row, hwa_ref[...], preferred_element_type=jnp.float32)
         + jnp.dot(oh_col, hwb_ref[...], preferred_element_type=jnp.float32))
    if edges_in_d == 1:
        x = x + edata[:, 6:7] * w1c_ref[...]                    # [TE,1] * [1,H]
    else:
        x = x + jnp.dot(edata[:, 6:6 + edges_in_d], w1c_ref[...],
                        preferred_element_type=jnp.float32)
    x = x * jax.nn.sigmoid(x)                                   # SiLU (f32, EUP)
    x = jnp.dot(x.astype(jnp.bfloat16), w2_ref[...],
                preferred_element_type=jnp.float32) + b2_ref[...]
    x = x * jax.nn.sigmoid(x)                                   # SiLU (f32, EUP)
    s = jnp.dot(x.astype(jnp.bfloat16), w3_ref[...],
                preferred_element_type=jnp.float32)             # [TE, 1]
    if use_tanh:
        s = jnp.tanh(s) * coords_range

    # trans4 columns 0..2 = (coord_diff * edge_mask) * s ; column 3 = valid flag
    # (valid becomes the per-node segment count for 'mean' -> one fused scatter).
    lane4 = jax.lax.broadcasted_iota(jnp.int32, (te, 4), 1)
    scale4 = jnp.where(lane4 < 3, s, jnp.float32(1.0))          # [TE, 4]
    trans4 = edata[:, 2:6] * scale4                             # f32: no bf16 rounding

    # Scatter-add over `row` into a lane-dense [4, N] accumulator. Both operands
    # stay f32; only the tiny [TE, 4] operand is contracted over dim 0, never
    # the [TE, N] one-hot.
    acc_ref[...] += jax.lax.dot_general(
        trans4, oh_row_f32,
        dimension_numbers=(((0,), (0,)), ((), ())),
        preferred_element_type=jnp.float32)                     # [4, N]


# --------------------------------- wrapper -------------------------------------
def equivariant_update(h, coord, row, col, coord_diff, edge_attr,
                       edge_mask=None, node_mask=None, update_coords_mask=None,
                       params=None, *, tanh=False, coords_range=10.0,
                       normalization_factor=100.0, aggregation_method="sum",
                       edge_tile=None, num_core_splits=None):
    """Forward pass of EquivariantUpdate. `params` = (W1, b1, W2, b2, W3) in the
    original torch layout (W* are [out, in])."""
    N, H = h.shape
    E = row.shape[0]
    W1, b1, W2, b2, W3 = params
    De = W1.shape[1] - 2 * H
    f32 = jnp.float32

    kind = _device_kind()
    C = _num_core_splits(kind) if num_core_splits is None else max(1, int(num_core_splits))

    ew = max(8, 6 + De)
    edge_tile, vmem_limit = _choose_tile_and_vmem(N, H, ew, E, C, edge_tile, kind)
    steps_per_core = max(1, -(-E // (C * edge_tile)))
    E_pad = C * edge_tile * steps_per_core

    # ---- hoisted layer-1 work (plain XLA matmuls, done once) ----
    h32 = h.astype(f32)
    W1T = W1.astype(f32).T                                  # [2H+De, H]
    w1a, w1b, w1c = W1T[:H], W1T[H:2 * H], W1T[2 * H:]
    hwa = (h32 @ w1a + b1.astype(f32)[None, :]).astype(jnp.bfloat16)   # b1 folded in
    hwb = (h32 @ w1b).astype(jnp.bfloat16)
    w1ck = w1c.astype(f32)                                  # [De, H]
    w2k = W2.astype(f32).T.astype(jnp.bfloat16)             # [H, H]
    b2k = b2.astype(f32).reshape(1, H)
    w3k = W3.astype(f32).T.astype(jnp.bfloat16)             # [H, 1]

    # ---- pack per-edge data: [row|col bits | cdiff*emask | valid | eattr | pad] ----
    em = jnp.ones((E, 1), f32) if edge_mask is None else edge_mask.astype(f32).reshape(E, 1)
    cdm = coord_diff.astype(f32) * em
    valid = jnp.ones((E, 1), f32)
    ea = edge_attr.astype(f32).reshape(E, De)
    rc_i = jnp.stack([row.astype(jnp.int32), col.astype(jnp.int32)], axis=1)   # [E, 2]
    rc_f = jax.lax.bitcast_convert_type(rc_i, f32)           # bit-exact through pad/concat
    pieces = [rc_f, cdm, valid, ea]
    if ew > 6 + De:
        pieces.append(jnp.zeros((E, ew - (6 + De)), f32))
    edata = jnp.concatenate(pieces, axis=1)                   # [E, ew]
    if E_pad > E:
        # Padded edges: row = col = 0, cdiff = 0, valid = 0 -> they contribute
        # exactly 0 to both the xyz sums and the 'mean' count.
        edata = jnp.pad(edata, ((0, E_pad - E), (0, 0)))

    kernel = functools.partial(
        _equiv_update_kernel, num_nodes=N, edges_in_d=De,
        use_tanh=tanh, coords_range=coords_range)

    def invariant(arr):
        shp = arr.shape
        # Grid-invariant: fetched once, single-buffered to halve its VMEM cost.
        return pl.BlockSpec(shp, lambda c, e: (0,) * len(shp),
                            pipeline_mode=pl.Buffered(1))

    per_edge = pl.BlockSpec((edge_tile, ew),
                            lambda c, e: (c * steps_per_core + e, 0))

    flops = int(E_pad) * (4 * N * H + 2 * H * H + 2 * H + 8 * N + 12 * H)
    transc = int(E_pad) * (2 * H + (1 if tanh else 0))
    bytes_acc = int(edata.size * 4 + hwa.size * 2 + hwb.size * 2
                    + w2k.size * 2 + C * 4 * N * 4 + 4096)

    parts = pl.pallas_call(
        kernel,
        out_shape=jax.ShapeDtypeStruct((C, 4, N), jnp.float32),
        grid_spec=pltpu.PrefetchScalarGridSpec(
            num_scalar_prefetch=0,
            grid=(C, steps_per_core),
            in_specs=[per_edge,
                      invariant(hwa), invariant(hwb), invariant(w1ck),
                      invariant(w2k), invariant(b2k), invariant(w3k)],
            out_specs=pl.BlockSpec((None, 4, N), lambda c, e: (c, 0, 0)),
        ),
        compiler_params=pltpu.CompilerParams(
            dimension_semantics=("parallel", "arbitrary"),
            vmem_limit_bytes=vmem_limit),
        cost_estimate=pl.CostEstimate(flops=flops, transcendentals=transc,
                                      bytes_accessed=bytes_acc),
    )(edata, hwa, hwb, w1ck, w2k, b2k, w3k)

    # ---- epilogue: tiny elementwise work on [N, 3], done as plain XLA ----
    acc = parts.sum(axis=0)                                   # [4, N] f32
    agg = acc[0:3, :].T                                       # [N, 3]
    if aggregation_method == "sum":
        agg = agg / normalization_factor
    elif aggregation_method == "mean":
        cnt = acc[3, :].reshape(N, 1)
        agg = agg / jnp.where(cnt == 0.0, 1.0, cnt)
    if update_coords_mask is not None:
        agg = update_coords_mask.astype(f32).reshape(N, 1) * agg
    coord_new = coord.astype(f32) + agg
    if node_mask is not None:
        coord_new = coord_new * node_mask.astype(f32).reshape(N, 1)
    return coord_new.astype(coord.dtype)


# ----------------------------- parameter init --------------------------------
def xavier_uniform(key, out_in, gain=1.0):
    fan_out, fan_in = out_in
    bound = gain * math.sqrt(6.0 / (fan_in + fan_out))
    return jax.random.uniform(key, out_in, jnp.float32, -bound, bound)


def init_params(key, hidden_dim, edges_in_d=1):
    input_edge = 2 * hidden_dim + edges_in_d
    k1, k2, k3, kb1, kb2 = jax.random.split(key, 5)
    W1 = xavier_uniform(k1, (hidden_dim, input_edge))         # [out, in]
    W2 = xavier_uniform(k2, (hidden_dim, hidden_dim))
    W3 = xavier_uniform(k3, (1, hidden_dim))                  # no bias
    b1 = jax.random.uniform(kb1, (hidden_dim,), jnp.float32,
                            -1.0 / math.sqrt(input_edge), 1.0 / math.sqrt(input_edge))
    b2 = jax.random.uniform(kb2, (hidden_dim,), jnp.float32,
                            -1.0 / math.sqrt(hidden_dim), 1.0 / math.sqrt(hidden_dim))
    return (W1, b1, W2, b2, W3)


# ------------------------------ pure-JAX ref ----------------------------------
def ref_forward(h, coord, row, col, coord_diff, edge_attr, edge_mask,
                node_mask, update_coords_mask, params,
                *, tanh=False, coords_range=10.0,
                normalization_factor=100.0, aggregation_method="sum"):
    W1, b1, W2, b2, W3 = params
    inp = jnp.concatenate([h[row], h[col], edge_attr], axis=1)
    x = jax.nn.silu(inp @ W1.T + b1[None, :])
    x = jax.nn.silu(x @ W2.T + b2[None, :])
    s = x @ W3.T
    if tanh:
        s = jnp.tanh(s) * coords_range
    trans = coord_diff * s
    if edge_mask is not None:
        trans = trans * edge_mask
    agg = jax.ops.segment_sum(trans, row, num_segments=coord.shape[0])
    if aggregation_method == "sum":
        agg = agg / normalization_factor
    elif aggregation_method == "mean":
        cnt = jax.ops.segment_sum(jnp.ones_like(trans), row,
                                  num_segments=coord.shape[0])
        agg = agg / jnp.where(cnt == 0.0, 1.0, cnt)
    if update_coords_mask is not None:
        agg = update_coords_mask * agg
    coord = coord + agg
    if node_mask is not None:
        coord = coord * node_mask
    return coord


# --------------------------------- demo ---------------------------------------
if __name__ == "__main__":
    N, H, E = 8, 32, 200            # nodes, hidden_dim, edges (E not tile-aligned)
    key = jax.random.PRNGKey(0)
    kh, kc, kr, kk, kd, ka, kem, knm, kp = jax.random.split(key, 9)

    h = jax.random.normal(kh, (N, H), jnp.float32)
    coord = jax.random.normal(kc, (N, 3), jnp.float32)
    row = jax.random.randint(kr, (E,), 0, N, jnp.int32)
    col = jax.random.randint(kk, (E,), 0, N, jnp.int32)
    coord_diff = jax.random.normal(kd, (E, 3), jnp.float32)
    edge_attr = jax.random.normal(ka, (E, 1), jnp.float32)
    edge_mask = jax.random.bernoulli(kem, 0.8, (E, 1)).astype(jnp.float32)
    node_mask = jax.random.bernoulli(knm, 0.9, (N, 1)).astype(jnp.float32)
    update_coords_mask = jnp.ones((N, 1), jnp.float32)

    params = init_params(kp, H, edges_in_d=1)

    # Two configurations: (sum, no tanh) and (mean, tanh). Tolerances account
    # for bf16 MXU gather/MLP operands (scatter + accumulation are f32).
    for agg_method, use_tanh, crange, tol in [("sum", False, 10.0, 2e-2),
                                              ("mean", True, 1.0, 5e-2)]:
        out = equivariant_update(
            h, coord, row, col, coord_diff, edge_attr,
            edge_mask=edge_mask, node_mask=node_mask,
            update_coords_mask=update_coords_mask, params=params,
            tanh=use_tanh, coords_range=crange,
            normalization_factor=100.0, aggregation_method=agg_method)
        out = jax.block_until_ready(out)

        ref = ref_forward(
            h, coord, row, col, coord_diff, edge_attr, edge_mask,
            node_mask, update_coords_mask, params,
            tanh=use_tanh, coords_range=crange,
            normalization_factor=100.0, aggregation_method=agg_method)

        assert out.shape == (N, 3)
        err = float(jnp.max(jnp.abs(out - ref)))
        assert jnp.allclose(out, ref, rtol=tol, atol=tol), (
            f"{agg_method}: max abs diff = {err}")

    print("KERNEL_OK")
</pallas_src>

<mosaic_0001>
module attributes {stable_mosaic.version = 11 : i64} {
  func.func @_equiv_update_kernel(%arg0: i32, %arg1: i32, %arg2: memref<256x8xf32, #tpu.memory_space<vmem>>, %arg3: memref<8x32xbf16, #tpu.memory_space<vmem>>, %arg4: memref<8x32xbf16, #tpu.memory_space<vmem>>, %arg5: memref<1x32xf32, #tpu.memory_space<vmem>>, %arg6: memref<32x32xbf16, #tpu.memory_space<vmem>>, %arg7: memref<1x32xf32, #tpu.memory_space<vmem>>, %arg8: memref<32x1xbf16, #tpu.memory_space<vmem>>, %arg9: memref<1x4x8xf32, #tpu.memory_space<vmem>>) attributes {dimension_semantics = [#tpu.dimension_semantics<parallel>, #tpu.dimension_semantics<arbitrary>], iteration_bounds = array<i64: 1, 1>, scalar_prefetch = 0 : i64, scratch_operands = 0 : i64, tpu.core_type = #tpu.core_type<tc>, window_params = [{transform_indices = @transform_0, window_bounds = array<i64: 256, 8>}, {pipeline_mode = #tpu.pipeline_mode<synchronous>, transform_indices = @transform_1, window_bounds = array<i64: 8, 32>}, {pipeline_mode = #tpu.pipeline_mode<synchronous>, transform_indices = @transform_2, window_bounds = array<i64: 8, 32>}, {pipeline_mode = #tpu.pipeline_mode<synchronous>, transform_indices = @transform_3, window_bounds = array<i64: 1, 32>}, {pipeline_mode = #tpu.pipeline_mode<synchronous>, transform_indices = @transform_4, window_bounds = array<i64: 32, 32>}, {pipeline_mode = #tpu.pipeline_mode<synchronous>, transform_indices = @transform_5, window_bounds = array<i64: 1, 32>}, {pipeline_mode = #tpu.pipeline_mode<synchronous>, transform_indices = @transform_6, window_bounds = array<i64: 32, 1>}, {transform_indices = @transform_7, window_bounds = array<i64: 1, 4, 8>}]} {
    %c0_i32 = arith.constant 0 : i32
    %0 = arith.cmpi eq, %arg1, %c0_i32 : i32
    %1 = arith.extui %0 : i1 to i32
    %c0_i32_0 = arith.constant 0 : i32
    %2 = arith.cmpi ne, %1, %c0_i32_0 : i32
    scf.if %2 {
      %cst_27 = arith.constant 0.000000e+00 : f32
      %67 = vector.broadcast %cst_27 : f32 to vector<4x8xf32>
      %c0_28 = arith.constant 0 : index
      %c0_29 = arith.constant 0 : index
      %c0_30 = arith.constant 0 : index
      %68 = vector.load %arg9[%c0_28, %c0_29, %c0_30] : memref<1x4x8xf32, #tpu.memory_space<vmem>>, vector<1x4x8xf32>
      %69 = vector.shape_cast %68 : vector<1x4x8xf32> to vector<4x8xf32>
      %70 = vector.shape_cast %67 : vector<4x8xf32> to vector<1x4x8xf32>
      tpu.vector_store %arg9[%c0_28, %c0_29, %c0_30], %70 {strides = array<i32>} : memref<1x4x8xf32, #tpu.memory_space<vmem>>, vector<1x4x8xf32>,
    } else {
    }
    %c0 = arith.constant 0 : index
    %c0_1 = arith.constant 0 : index
    %3 = vector.load %arg2[%c0, %c0_1] : memref<256x8xf32, #tpu.memory_space<vmem>>, vector<256x8xf32>
    %4 = vector.extract_strided_slice %3 {offsets = [0, 0], sizes = [256, 2], strides = [1, 1]} : vector<256x8xf32> to vector<256x2xf32>
    %5 = tpu.bitcast %4 : vector<256x2xf32> -> vector<256x2xi32>
    %6 = vector.extract_strided_slice %5 {offsets = [0, 0], sizes = [256, 1], strides = [1, 1]} : vector<256x2xi32> to vector<256x1xi32>
    %7 = vector.extract_strided_slice %5 {offsets = [0, 1], sizes = [256, 1], strides = [1, 1]} : vector<256x2xi32> to vector<256x1xi32>
    %8 = tpu.iota {dimensions = array<i32: 1>} : vector<256x8xi32>
    %9 = vector.broadcast %6 : vector<256x1xi32> to vector<256x8xi32>
    %10 = arith.cmpi eq, %8, %9 : vector<256x8xi32>
    %11 = arith.extui %10 : vector<256x8xi1> to vector<256x8xi32>
    %12 = arith.sitofp %11 : vector<256x8xi32> to vector<256x8xf32>
    %13 = arith.truncf %12 : vector<256x8xf32> to vector<256x8xbf16>
    %14 = vector.broadcast %7 : vector<256x1xi32> to vector<256x8xi32>
    %15 = arith.cmpi eq, %8, %14 : vector<256x8xi32>
    %16 = arith.extui %15 : vector<256x8xi1> to vector<256x8xi32>
    %17 = arith.sitofp %16 : vector<256x8xi32> to vector<256x8xf32>
    %18 = arith.truncf %17 : vector<256x8xf32> to vector<256x8xbf16>
    %c0_2 = arith.constant 0 : index
    %c0_3 = arith.constant 0 : index
    %19 = vector.load %arg3[%c0_2, %c0_3] : memref<8x32xbf16, #tpu.memory_space<vmem>>, vector<8x32xbf16>
    %cst = arith.constant dense<0.000000e+00> : vector<256x32xf32>
    %20 = tpu.matmul %13, %19, %cst {dimension_numbers = #tpu.dot_dimension_numbers<[1], [0], [0], [1], [0, 0, 1, 1], [], []>} : vector<256x8xbf16>, vector<8x32xbf16>, vector<256x32xf32> -> vector<256x32xf32>
    %c0_4 = arith.constant 0 : index
    %c0_5 = arith.constant 0 : index
    %21 = vector.load %arg4[%c0_4, %c0_5] : memref<8x32xbf16, #tpu.memory_space<vmem>>, vector<8x32xbf16>
    %cst_6 = arith.constant dense<0.000000e+00> : vector<256x32xf32>
    %22 = tpu.matmul %18, %21, %cst_6 {dimension_numbers = #tpu.dot_dimension_numbers<[1], [0], [0], [1], [0, 0, 1, 1], [], []>} : vector<256x8xbf16>, vector<8x32xbf16>, vector<256x32xf32> -> vector<256x32xf32>
    %23 = arith.addf %20, %22 : vector<256x32xf32>
    %24 = vector.extract_strided_slice %3 {offsets = [0, 6], sizes = [256, 1], strides = [1, 1]} : vector<256x8xf32> to vector<256x1xf32>
    %c0_7 = arith.constant 0 : index
    %c0_8 = arith.constant 0 : index
    %25 = vector.load %arg5[%c0_7, %c0_8] : memref<1x32xf32, #tpu.memory_space<vmem>>, vector<1x32xf32>
    %26 = vector.broadcast %24 : vector<256x1xf32> to vector<256x32xf32>
    %27 = vector.broadcast %25 : vector<1x32xf32> to vector<256x32xf32>
    %28 = arith.mulf %26, %27 : vector<256x32xf32>
    %29 = arith.addf %23, %28 : vector<256x32xf32>
    %30 = arith.negf %29 : vector<256x32xf32>
    %31 = math.exp %30 : vector<256x32xf32>
    %cst_9 = arith.constant 1.000000e+00 : f32
    %32 = vector.broadcast %cst_9 : f32 to vector<256x32xf32>
    %33 = arith.addf %32, %31 : vector<256x32xf32>
    %34 = arith.divf %32, %33 : vector<256x32xf32>
    %35 = arith.mulf %29, %34 : vector<256x32xf32>
    %36 = arith.truncf %35 : vector<256x32xf32> to vector<256x32xbf16>
    %c0_10 = arith.constant 0 : index
    %c0_11 = arith.constant 0 : index
    %37 = vector.load %arg6[%c0_10, %c0_11] : memref<32x32xbf16, #tpu.memory_space<vmem>>, vector<32x32xbf16>
    %cst_12 = arith.constant dense<0.000000e+00> : vector<256x32xf32>
    %38 = tpu.matmul %36, %37, %cst_12 {dimension_numbers = #tpu.dot_dimension_numbers<[1], [0], [0], [1], [0, 0, 1, 1], [], []>} : vector<256x32xbf16>, vector<32x32xbf16>, vector<256x32xf32> -> vector<256x32xf32>
    %c0_13 = arith.constant 0 : index
    %c0_14 = arith.constant 0 : index
    %39 = vector.load %arg7[%c0_13, %c0_14] : memref<1x32xf32, #tpu.memory_space<vmem>>, vector<1x32xf32>
    %40 = vector.broadcast %39 : vector<1x32xf32> to vector<256x32xf32>
    %41 = arith.addf %38, %40 : vector<256x32xf32>
    %42 = arith.negf %41 : vector<256x32xf32>
    %43 = math.exp %42 : vector<256x32xf32>
    %cst_15 = arith.constant 1.000000e+00 : f32
    %44 = vector.broadcast %cst_15 : f32 to vector<256x32xf32>
    %45 = arith.addf %44, %43 : vector<256x32xf32>
    %46 = arith.divf %44, %45 : vector<256x32xf32>
    %47 = arith.mulf %41, %46 : vector<256x32xf32>
    %48 = arith.truncf %47 : vector<256x32xf32> to vector<256x32xbf16>
    %c0_16 = arith.constant 0 : index
    %c0_17 = arith.constant 0 : index
    %49 = vector.load %arg8[%c0_16, %c0_17] : memref<32x1xbf16, #tpu.memory_space<vmem>>, vector<32x1xbf16>
    %cst_18 = arith.constant dense<0.000000e+00> : vector<256x1xf32>
    %50 = tpu.matmul %48, %49, %cst_18 {dimension_numbers = #tpu.dot_dimension_numbers<[1], [0], [0], [1], [0, 0, 1, 1], [], []>} : vector<256x32xbf16>, vector<32x1xbf16>, vector<256x1xf32> -> vector<256x1xf32>
    %51 = tpu.iota {dimensions = array<i32: 1>} : vector<256x4xi32>
    %c3_i32 = arith.constant 3 : i32
    %52 = vector.broadcast %c3_i32 : i32 to vector<256x4xi32>
    %53 = arith.cmpi slt, %51, %52 : vector<256x4xi32>
    %cst_19 = arith.constant 1.000000e+00 : f32
    %54 = vector.shape_cast %50 : vector<256x1xf32> to vector<256x1xf32>
    %55 = vector.broadcast %54 : vector<256x1xf32> to vector<256x4xf32>
    %56 = vector.broadcast %cst_19 : f32 to vector<256x4xf32>
    %57 = arith.select %53, %55, %56 : vector<256x4xi1>, vector<256x4xf32>
    %58 = vector.extract_strided_slice %3 {offsets = [0, 2], sizes = [256, 4], strides = [1, 1]} : vector<256x8xf32> to vector<256x4xf32>
    %59 = arith.mulf %58, %57 : vector<256x4xf32>
    %c0_20 = arith.constant 0 : index
    %c0_21 = arith.constant 0 : index
    %c0_22 = arith.constant 0 : index
    %60 = vector.load %arg9[%c0_20, %c0_21, %c0_22] : memref<1x4x8xf32, #tpu.memory_space<vmem>>, vector<1x4x8xf32>
    %61 = vector.shape_cast %60 : vector<1x4x8xf32> to vector<4x8xf32>
    %cst_23 = arith.constant dense<0.000000e+00> : vector<4x8xf32>
    %62 = tpu.matmul %59, %12, %cst_23 {dimension_numbers = #tpu.dot_dimension_numbers<[0], [0], [1], [1], [0, 1, 1, 1], [], []>} : vector<256x4xf32>, vector<256x8xf32>, vector<4x8xf32> -> vector<4x8xf32>
    %63 = arith.addf %61, %62 : vector<4x8xf32>
    %c0_24 = arith.constant 0 : index
    %c0_25 = arith.constant 0 : index
    %c0_26 = arith.constant 0 : index
    %64 = vector.load %arg9[%c0_24, %c0_25, %c0_26] : memref<1x4x8xf32, #tpu.memory_space<vmem>>, vector<1x4x8xf32>
    %65 = vector.shape_cast %64 : vector<1x4x8xf32> to vector<4x8xf32>
    %66 = vector.shape_cast %63 : vector<4x8xf32> to vector<1x4x8xf32>
    tpu.vector_store %arg9[%c0_24, %c0_25, %c0_26], %66 {strides = array<i32>} : memref<1x4x8xf32, #tpu.memory_space<vmem>>, vector<1x4x8xf32>,
    return
  }
  func.func @transform_0(%arg0: i32, %arg1: i32) -> (i32, i32) {
    %c1_i32 = arith.constant 1 : i32
    %0 = arith.muli %arg0, %c1_i32 : i32
    %1 = arith.addi %0, %arg1 : i32
    %c0_i32 = arith.constant 0 : i32
    %c0_i32_0 = arith.constant 0 : i32
    return %1, %c0_i32 : i32, i32
  }
  func.func @transform_1(%arg0: i32, %arg1: i32) -> (i32, i32) {
    %c0_i32 = arith.constant 0 : i32
    %c0_i32_0 = arith.constant 0 : i32
    %c0_i32_1 = arith.constant 0 : i32
    return %c0_i32, %c0_i32_0 : i32, i32
  }
  func.func @transform_2(%arg0: i32, %arg1: i32) -> (i32, i32) {
    %c0_i32 = arith.constant 0 : i32
    %c0_i32_0 = arith.constant 0 : i32
    %c0_i32_1 = arith.constant 0 : i32
    return %c0_i32, %c0_i32_0 : i32, i32
  }
  func.func @transform_3(%arg0: i32, %arg1: i32) -> (i32, i32) {
    %c0_i32 = arith.constant 0 : i32
    %c0_i32_0 = arith.constant 0 : i32
    %c0_i32_1 = arith.constant 0 : i32
    return %c0_i32, %c0_i32_0 : i32, i32
  }
  func.func @transform_4(%arg0: i32, %arg1: i32) -> (i32, i32) {
    %c0_i32 = arith.constant 0 : i32
    %c0_i32_0 = arith.constant 0 : i32
    %c0_i32_1 = arith.constant 0 : i32
    return %c0_i32, %c0_i32_0 : i32, i32
  }
  func.func @transform_5(%arg0: i32, %arg1: i32) -> (i32, i32) {
    %c0_i32 = arith.constant 0 : i32
    %c0_i32_0 = arith.constant 0 : i32
    %c0_i32_1 = arith.constant 0 : i32
    return %c0_i32, %c0_i32_0 : i32, i32
  }
  func.func @transform_6(%arg0: i32, %arg1: i32) -> (i32, i32) {
    %c0_i32 = arith.constant 0 : i32
    %c0_i32_0 = arith.constant 0 : i32
    %c0_i32_1 = arith.constant 0 : i32
    return %c0_i32, %c0_i32_0 : i32, i32
  }
  func.func @transform_7(%arg0: i32, %arg1: i32) -> (i32, i32, i32) {
    %c0_i32 = arith.constant 0 : i32
    %c0_i32_0 = arith.constant 0 : i32
    %c0_i32_1 = arith.constant 0 : i32
    return %arg0, %c0_i32, %c0_i32_0 : i32, i32, i32
  }
}

</mosaic_0001>

<llo_original>
// kernel: tpu_custom_call.1
$region0: #{tpu_custom_call.1}
  #allocation0 [shape = 'u32[]', space=smem, size = 0x4, offset = 0x4, fixed_abs, tag = 'smem constant byte address 0x4 - core index']
  #allocation1 [shape = 'u32[144,128]{1,0:T(1,128)}', space=vmem, size = 0x12000, scoped, tag = 'internal scratch']
  %s0 = inlined_call_operand.vmem [shape: f32[256,8], index: 0, kind: input, shape index: {}]
  %s1 = inlined_call_operand.vmem [shape: bf16[8,32], index: 1, kind: input, shape index: {}]
  %s2 = inlined_call_operand.vmem [shape: bf16[8,32], index: 2, kind: input, shape index: {}]
  %s3 = inlined_call_operand.vmem [shape: f32[1,32], index: 3, kind: input, shape index: {}]
  %s4 = inlined_call_operand.vmem [shape: bf16[32,32], index: 4, kind: input, shape index: {}]
  %s5 = inlined_call_operand.vmem [shape: f32[1,32], index: 5, kind: input, shape index: {}]
  %s6 = inlined_call_operand.vmem [shape: bf16[32,1], index: 6, kind: input, shape index: {}]
  %s7 = inlined_call_operand.hbm [shape: f32[1,4,8], index: 7, kind: output, shape index: {}]
  %s8 = sld [smem:[#allocation0]]
  $region42: #{tpu_custom_call.1} parent=0
    _
  %s10 = ssub.s32 1, %s8
  %s11 = scalar_select 0, %s10, %s8
  $region1: #{tpu_custom_call.1} parent=0
    #allocation2 [shape = 'u8[2048]{0}', space=vmem, size = 0x800, scoped, tag = 'output window, operand 0, single buffered']
    #allocation3 [shape = 's32[1]{0}', space=sflag, size = 0x4, scoped, tag = 'scoped memory for tpu_custom_call.1']
    %12 = vsyncpa [#allocation3], 0
    // Predicated region
    $region2: #{tpu_custom_call.1} parent=1 // pred_check
      _
    $region3: #{tpu_custom_call.1} parent=1 // pred_check_branch
      %14 = sbr.rel (0) target = $region5
    $region4: #{tpu_custom_call.1} parent=1 // pred_region
      %s15 = sadd.s32 0, 0
      %s16 = smul.u32 32, %s15
      %p17 = scmp.lt.s32.totalorder %s16, 31
      %s18 = scalar_select %p17, %s16, 31
      %s19 = smul.addr %s18, 8
      %s20 = scalar_lea.vmem %s0, %s19
      %s21 = sadd.s32 0, 0
      %s22 = smul.u32 32, %s21
    $region5: #{tpu_custom_call.1} parent=1 // pred_fallthru
      _
    // Predicated region
    $region6: #{tpu_custom_call.1} parent=1 // pred_check
      _
    $region7: #{tpu_custom_call.1} parent=1 // pred_check_branch
      %24 = sbr.rel (0) target = $region9
    $region8: #{tpu_custom_call.1} parent=1 // pred_region
      _
    $region9: #{tpu_custom_call.1} parent=1 // pred_fallthru
      _
    // Predicated region
    $region10: #{tpu_custom_call.1} parent=1 // pred_check
      _
    $region11: #{tpu_custom_call.1} parent=1 // pred_check_branch
      %26 = sbr.rel (0) target = $region13
    $region12: #{tpu_custom_call.1} parent=1 // pred_region
      _
    $region13: #{tpu_custom_call.1} parent=1 // pred_fallthru
      _
    // Predicated region
    $region14: #{tpu_custom_call.1} parent=1 // pred_check
      _
    $region15: #{tpu_custom_call.1} parent=1 // pred_check_branch
      %28 = sbr.rel (0) target = $region17
    $region16: #{tpu_custom_call.1} parent=1 // pred_region
      _
    $region17: #{tpu_custom_call.1} parent=1 // pred_fallthru
      _
    // Predicated region
    $region18: #{tpu_custom_call.1} parent=1 // pred_check
      _
    $region19: #{tpu_custom_call.1} parent=1 // pred_check_branch
      %30 = sbr.rel (0) target = $region21
    $region20: #{tpu_custom_call.1} parent=1 // pred_region
      _
    $region21: #{tpu_custom_call.1} parent=1 // pred_fallthru
      _
    // Predicated region
    $region22: #{tpu_custom_call.1} parent=1 // pred_check
      _
    $region23: #{tpu_custom_call.1} parent=1 // pred_check_branch
      %32 = sbr.rel (0) target = $region25
    $region24: #{tpu_custom_call.1} parent=1 // pred_region
      _
    $region25: #{tpu_custom_call.1} parent=1 // pred_fallthru
      _
    // Predicated region
    $region26: #{tpu_custom_call.1} parent=1 // pred_check
      _
    $region27: #{tpu_custom_call.1} parent=1 // pred_check_branch
      %34 = sbr.rel (0) target = $region29
    $region28: #{tpu_custom_call.1} parent=1 // pred_region
      _
    $region29: #{tpu_custom_call.1} parent=1 // pred_fallthru
      _
    %s35 = sadd.s32 0, 0
    %s36 = smul.u32 32, %s35
    %p37 = scmp.lt.s32.totalorder %s36, 31
    %s38 = scalar_select %p37, %s36, 31
    %s39 = smul.addr %s38, 8
    %s40 = scalar_lea.vmem %s0, %s39
    %s41 = sadd.s32 0, 0
    %s42 = smul.u32 32, %s41
    %p43 = scmp.lt.s32.totalorder %s42, 31
    %s44 = scalar_select %p43, %s42, 31
    %s45 = smul.addr %s44, 8
    %s46 = scalar_lea.vmem %s0, %s45
    %s47 = sadd.s32 0, 0
    %s48 = smul.u32 32, %s47
    %p50 = scmp.eq.s32.totalorder 0, 0
    // Predicated region
    $region30: #{tpu_custom_call.1} parent=1 // pred_check
      %p51 = pneg %p50
    $region31: #{tpu_custom_call.1} parent=1 // pred_check_branch
      %53 = sbr.rel (%p51) target = $region33
    $region32: #{tpu_custom_call.1} parent=1 // pred_region
      %vm54 = vcmask 60416
      %55 = vst.msk [vmem:[#allocation2] sm:$0xf] %vm54, 0.0
    $region33: #{tpu_custom_call.1} parent=1 // pred_fallthru
      _
    %v56 = vld [vmem:[%s46] sm:$0xff]
    %v57 = vld [vmem:[%s46 + $0x8] sm:$0xff]
    %v58 = vld [vmem:[%s46 + $0x10] sm:$0xff]
    %v59 = vld [vmem:[%s46 + $0x18] sm:$0xff]
    %v60 = vld [vmem:[%s46 + $0x20] sm:$0xff]
    %v61 = vld [vmem:[%s46 + $0x28] sm:$0xff]
    %v62 = vld [vmem:[%s46 + $0x30] sm:$0xff]
    %v63 = vld [vmem:[%s46 + $0x38] sm:$0xff]
    %v64 = vld [vmem:[%s46 + $0x40] sm:$0xff]
    %v65 = vld [vmem:[%s46 + $0x48] sm:$0xff]
    %v66 = vld [vmem:[%s46 + $0x50] sm:$0xff]
    %v67 = vld [vmem:[%s46 + $0x58] sm:$0xff]
    %v68 = vld [vmem:[%s46 + $0x60] sm:$0xff]
    %v69 = vld [vmem:[%s46 + $0x68] sm:$0xff]
    %v70 = vld [vmem:[%s46 + $0x70] sm:$0xff]
    %v71 = vld [vmem:[%s46 + $0x78] sm:$0xff]
    %v72 = vld [vmem:[%s46 + $0x80] sm:$0xff]
    %v73 = vld [vmem:[%s46 + $0x88] sm:$0xff]
    %v74 = vld [vmem:[%s46 + $0x90] sm:$0xff]
    %v75 = vld [vmem:[%s46 + $0x98] sm:$0xff]
    %v76 = vld [vmem:[%s46 + $0xa0] sm:$0xff]
    %v77 = vld [vmem:[%s46 + $0xa8] sm:$0xff]
    %v78 = vld [vmem:[%s46 + $0xb0] sm:$0xff]
    %v79 = vld [vmem:[%s46 + $0xb8] sm:$0xff]
    %v80 = vld [vmem:[%s46 + $0xc0] sm:$0xff]
    %v81 = vld [vmem:[%s46 + $0xc8] sm:$0xff]
    %v82 = vld [vmem:[%s46 + $0xd0] sm:$0xff]
    %v83 = vld [vmem:[%s46 + $0xd8] sm:$0xff]
    %v84 = vld [vmem:[%s46 + $0xe0] sm:$0xff]
    %v85 = vld [vmem:[%s46 + $0xe8] sm:$0xff]
    %v86 = vld [vmem:[%s46 + $0xf0] sm:$0xff]
    %v87 = vld [vmem:[%s46 + $0xf8] sm:$0xff]
    %v120 = vlaneseq
    %v121 = vand.u32 %v120, 127
    %122 = vset.pattern.permute.xlu0 0
    %123 = vperm.xlu0 %122, %v56
    %v124 = vpop.permute.xlu0 %123
    %125 = vset.pattern.permute.xlu0 0
    %126 = vperm.xlu0 %125, %v57
    %v127 = vpop.permute.xlu0 %126
    %128 = vset.pattern.permute.xlu0 0
    %129 = vperm.xlu0 %128, %v58
    %v130 = vpop.permute.xlu0 %129
    %131 = vset.pattern.permute.xlu0 0
    %132 = vperm.xlu0 %131, %v59
    %v133 = vpop.permute.xlu0 %132
    %134 = vset.pattern.permute.xlu0 0
    %135 = vperm.xlu0 %134, %v60
    %v136 = vpop.permute.xlu0 %135
    %137 = vset.pattern.permute.xlu0 0
    %138 = vperm.xlu0 %137, %v61
    %v139 = vpop.permute.xlu0 %138
    %140 = vset.pattern.permute.xlu0 0
    %141 = vperm.xlu0 %140, %v62
    %v142 = vpop.permute.xlu0 %141
    %143 = vset.pattern.permute.xlu0 0
    %144 = vperm.xlu0 %143, %v63
    %v145 = vpop.permute.xlu0 %144
    %146 = vset.pattern.permute.xlu0 0
    %147 = vperm.xlu0 %146, %v64
    %v148 = vpop.permute.xlu0 %147
    %149 = vset.pattern.permute.xlu0 0
    %150 = vperm.xlu0 %149, %v65
    %v151 = vpop.permute.xlu0 %150
    %152 = vset.pattern.permute.xlu0 0
    %153 = vperm.xlu0 %152, %v66
    %v154 = vpop.permute.xlu0 %153
    %155 = vset.pattern.permute.xlu0 0
    %156 = vperm.xlu0 %155, %v67
    %v157 = vpop.permute.xlu0 %156
    %158 = vset.pattern.permute.xlu0 0
    %159 = vperm.xlu0 %158, %v68
    %v160 = vpop.permute.xlu0 %159
    %161 = vset.pattern.permute.xlu0 0
    %162 = vperm.xlu0 %161, %v69
    %v163 = vpop.permute.xlu0 %162
    %164 = vset.pattern.permute.xlu0 0
    %165 = vperm.xlu0 %164, %v70
    %v166 = vpop.permute.xlu0 %165
    %167 = vset.pattern.permute.xlu0 0
    %168 = vperm.xlu0 %167, %v71
    %v169 = vpop.permute.xlu0 %168
    %170 = vset.pattern.permute.xlu0 0
    %171 = vperm.xlu0 %170, %v72
    %v172 = vpop.permute.xlu0 %171
    %173 = vset.pattern.permute.xlu0 0
    %174 = vperm.xlu0 %173, %v73
    %v175 = vpop.permute.xlu0 %174
    %176 = vset.pattern.permute.xlu0 0
    %177 = vperm.xlu0 %176, %v74
    %v178 = vpop.permute.xlu0 %177
    %179 = vset.pattern.permute.xlu0 0
    %180 = vperm.xlu0 %179, %v75
    %v181 = vpop.permute.xlu0 %180
    %182 = vset.pattern.permute.xlu0 0
    %183 = vperm.xlu0 %182, %v76
    %v184 = vpop.permute.xlu0 %183
    %185 = vset.pattern.permute.xlu0 0
    %186 = vperm.xlu0 %185, %v77
    %v187 = vpop.permute.xlu0 %186
    %188 = vset.pattern.permute.xlu0 0
    %189 = vperm.xlu0 %188, %v78
    %v190 = vpop.permute.xlu0 %189
    %191 = vset.pattern.permute.xlu0 0
    %192 = vperm.xlu0 %191, %v79
    %v193 = vpop.permute.xlu0 %192
    %194 = vset.pattern.permute.xlu0 0
    %195 = vperm.xlu0 %194, %v80
    %v196 = vpop.permute.xlu0 %195
    %197 = vset.pattern.permute.xlu0 0
    %198 = vperm.xlu0 %197, %v81
    %v199 = vpop.permute.xlu0 %198
    %200 = vset.pattern.permute.xlu0 0
    %201 = vperm.xlu0 %200, %v82
    %v202 = vpop.permute.xlu0 %201
    %203 = vset.pattern.permute.xlu0 0
    %204 = vperm.xlu0 %203, %v83
    %v205 = vpop.permute.xlu0 %204
    %206 = vset.pattern.permute.xlu0 0
    %207 = vperm.xlu0 %206, %v84
    %v208 = vpop.permute.xlu0 %207
    %209 = vset.pattern.permute.xlu0 0
    %210 = vperm.xlu0 %209, %v85
    %v211 = vpop.permute.xlu0 %210
    %212 = vset.pattern.permute.xlu0 0
    %213 = vperm.xlu0 %212, %v86
    %v214 = vpop.permute.xlu0 %213
    %215 = vset.pattern.permute.xlu0 0
    %216 = vperm.xlu0 %215, %v87
    %v217 = vpop.permute.xlu0 %216
    %vm218 = vcmp.eq.s32.totalorder %v121, %v124
    %vm219 = vcmp.eq.s32.totalorder %v121, %v127
    %vm220 = vcmp.eq.s32.totalorder %v121, %v130
    %vm221 = vcmp.eq.s32.totalorder %v121, %v133
    %vm222 = vcmp.eq.s32.totalorder %v121, %v136
    %vm223 = vcmp.eq.s32.totalorder %v121, %v139
    %vm224 = vcmp.eq.s32.totalorder %v121, %v142
    %vm225 = vcmp.eq.s32.totalorder %v121, %v145
    %vm226 = vcmp.eq.s32.totalorder %v121, %v148
    %vm227 = vcmp.eq.s32.totalorder %v121, %v151
    %vm228 = vcmp.eq.s32.totalorder %v121, %v154
    %vm229 = vcmp.eq.s32.totalorder %v121, %v157
    %vm230 = vcmp.eq.s32.totalorder %v121, %v160
    %vm231 = vcmp.eq.s32.totalorder %v121, %v163
    %vm232 = vcmp.eq.s32.totalorder %v121, %v166
    %vm233 = vcmp.eq.s32.totalorder %v121, %v169
    %vm234 = vcmp.eq.s32.totalorder %v121, %v172
    %vm235 = vcmp.eq.s32.totalorder %v121, %v175
    %vm236 = vcmp.eq.s32.totalorder %v121, %v178
    %vm237 = vcmp.eq.s32.totalorder %v121, %v181
    %vm238 = vcmp.eq.s32.totalorder %v121, %v184
    %vm239 = vcmp.eq.s32.totalorder %v121, %v187
    %vm240 = vcmp.eq.s32.totalorder %v121, %v190
    %vm241 = vcmp.eq.s32.totalorder %v121, %v193
    %vm242 = vcmp.eq.s32.totalorder %v121, %v196
    %vm243 = vcmp.eq.s32.totalorder %v121, %v199
    %vm244 = vcmp.eq.s32.totalorder %v121, %v202
    %vm245 = vcmp.eq.s32.totalorder %v121, %v205
    %vm246 = vcmp.eq.s32.totalorder %v121, %v208
    %vm247 = vcmp.eq.s32.totalorder %v121, %v211
    %vm248 = vcmp.eq.s32.totalorder %v121, %v214
    %vm249 = vcmp.eq.s32.totalorder %v121, %v217
    %v250 = vsel %vm218, 1, 0
    %v251 = vsel %vm219, 1, 0
    %v252 = vsel %vm220, 1, 0
    %v253 = vsel %vm221, 1, 0
    %v254 = vsel %vm222, 1, 0
    %v255 = vsel %vm223, 1, 0
    %v256 = vsel %vm224, 1, 0
    %v257 = vsel %vm225, 1, 0
    %v258 = vsel %vm226, 1, 0
    %v259 = vsel %vm227, 1, 0
    %v260 = vsel %vm228, 1, 0
    %v261 = vsel %vm229, 1, 0
    %v262 = vsel %vm230, 1, 0
    %v263 = vsel %vm231, 1, 0
    %v264 = vsel %vm232, 1, 0
    %v265 = vsel %vm233, 1, 0
    %v266 = vsel %vm234, 1, 0
    %v267 = vsel %vm235, 1, 0
    %v268 = vsel %vm236, 1, 0
    %v269 = vsel %vm237, 1, 0
    %v270 = vsel %vm238, 1, 0
    %v271 = vsel %vm239, 1, 0
    %v272 = vsel %vm240, 1, 0
    %v273 = vsel %vm241, 1, 0
    %v274 = vsel %vm242, 1, 0
    %v275 = vsel %vm243, 1, 0
    %v276 = vsel %vm244, 1, 0
    %v277 = vsel %vm245, 1, 0
    %v278 = vsel %vm246, 1, 0
    %v279 = vsel %vm247, 1, 0
    %v280 = vsel %vm248, 1, 0
    %v281 = vsel %vm249, 1, 0
    %v282 = vcvt.s32.f32 %v250
    %v283 = vcvt.s32.f32 %v251
    %v284 = vcvt.s32.f32 %v252
    %v285 = vcvt.s32.f32 %v253
    %v286 = vcvt.s32.f32 %v254
    %v287 = vcvt.s32.f32 %v255
    %v288 = vcvt.s32.f32 %v256
    %v289 = vcvt.s32.f32 %v257
    %v290 = vcvt.s32.f32 %v258
    %v291 = vcvt.s32.f32 %v259
    %v292 = vcvt.s32.f32 %v260
    %v293 = vcvt.s32.f32 %v261
    %v294 = vcvt.s32.f32 %v262
    %v295 = vcvt.s32.f32 %v263
    %v296 = vcvt.s32.f32 %v264
    %v297 = vcvt.s32.f32 %v265
    %v298 = vcvt.s32.f32 %v266
    %v299 = vcvt.s32.f32 %v267
    %v300 = vcvt.s32.f32 %v268
    %v301 = vcvt.s32.f32 %v269
    %v302 = vcvt.s32.f32 %v270
    %v303 = vcvt.s32.f32 %v271
    %v304 = vcvt.s32.f32 %v272
    %v305 = vcvt.s32.f32 %v273
    %v306 = vcvt.s32.f32 %v274
    %v307 = vcvt.s32.f32 %v275
    %v308 = vcvt.s32.f32 %v276
    %v309 = vcvt.s32.f32 %v277
    %v310 = vcvt.s32.f32 %v278
    %v311 = vcvt.s32.f32 %v279
    %v312 = vcvt.s32.f32 %v280
    %v313 = vcvt.s32.f32 %v281
    %v314 = vpack.c.bf16 %v283, %v282
    %v315 = vpack.c.bf16 %v285, %v284
    %v316 = vpack.c.bf16 %v287, %v286
    %v317 = vpack.c.bf16 %v289, %v288
    %v318 = vpack.c.bf16 %v291, %v290
    %v319 = vpack.c.bf16 %v293, %v292
    %v320 = vpack.c.bf16 %v295, %v294
    %v321 = vpack.c.bf16 %v297, %v296
    %v322 = vpack.c.bf16 %v299, %v298
    %v323 = vpack.c.bf16 %v301, %v300
    %v324 = vpack.c.bf16 %v303, %v302
    %v325 = vpack.c.bf16 %v305, %v304
    %v326 = vpack.c.bf16 %v307, %v306
    %v327 = vpack.c.bf16 %v309, %v308
    %v328 = vpack.c.bf16 %v311, %v310
    %v329 = vpack.c.bf16 %v313, %v312
    %330 = vset.pattern.permute.xlu0 1
    %331 = vperm.xlu0 %330, %v56
    %v332 = vpop.permute.xlu0 %331
    %333 = vset.pattern.permute.xlu0 1
    %334 = vperm.xlu0 %333, %v57
    %v335 = vpop.permute.xlu0 %334
    %336 = vset.pattern.permute.xlu0 1
    %337 = vperm.xlu0 %336, %v58
    %v338 = vpop.permute.xlu0 %337
    %339 = vset.pattern.permute.xlu0 1
    %340 = vperm.xlu0 %339, %v59
    %v341 = vpop.permute.xlu0 %340
    %342 = vset.pattern.permute.xlu0 1
    %343 = vperm.xlu0 %342, %v60
    %v344 = vpop.permute.xlu0 %343
    %345 = vset.pattern.permute.xlu0 1
    %346 = vperm.xlu0 %345, %v61
    %v347 = vpop.permute.xlu0 %346
    %348 = vset.pattern.permute.xlu0 1
    %349 = vperm.xlu0 %348, %v62
    %v350 = vpop.permute.xlu0 %349
    %351 = vset.pattern.permute.xlu0 1
    %352 = vperm.xlu0 %351, %v63
    %v353 = vpop.permute.xlu0 %352
    %354 = vset.pattern.permute.xlu0 1
    %355 = vperm.xlu0 %354, %v64
    %v356 = vpop.permute.xlu0 %355
    %357 = vset.pattern.permute.xlu0 1
    %358 = vperm.xlu0 %357, %v65
    %v359 = vpop.permute.xlu0 %358
    %360 = vset.pattern.permute.xlu0 1
    %361 = vperm.xlu0 %360, %v66
    %v362 = vpop.permute.xlu0 %361
    %363 = vset.pattern.permute.xlu0 1
    %364 = vperm.xlu0 %363, %v67
    %v365 = vpop.permute.xlu0 %364
    %366 = vset.pattern.permute.xlu0 1
    %367 = vperm.xlu0 %366, %v68
    %v368 = vpop.permute.xlu0 %367
    %369 = vset.pattern.permute.xlu0 1
    %370 = vperm.xlu0 %369, %v69
    %v371 = vpop.permute.xlu0 %370
    %372 = vset.pattern.permute.xlu0 1
    %373 = vperm.xlu0 %372, %v70
    %v374 = vpop.permute.xlu0 %373
    %375 = vset.pattern.permute.xlu0 1
    %376 = vperm.xlu0 %375, %v71
    %v377 = vpop.permute.xlu0 %376
    %378 = vset.pattern.permute.xlu0 1
    %379 = vperm.xlu0 %378, %v72
    %v380 = vpop.permute.xlu0 %379
    %381 = vset.pattern.permute.xlu0 1
    %382 = vperm.xlu0 %381, %v73
    %v383 = vpop.permute.xlu0 %382
    %384 = vset.pattern.permute.xlu0 1
    %385 = vperm.xlu0 %384, %v74
    %v386 = vpop.permute.xlu0 %385
    %387 = vset.pattern.permute.xlu0 1
    %388 = vperm.xlu0 %387, %v75
    %v389 = vpop.permute.xlu0 %388
    %390 = vset.pattern.permute.xlu0 1
    %391 = vperm.xlu0 %390, %v76
    %v392 = vpop.permute.xlu0 %391
    %393 = vset.pattern.permute.xlu0 1
    %394 = vperm.xlu0 %393, %v77
    %v395 = vpop.permute.xlu0 %394
    %396 = vset.pattern.permute.xlu0 1
    %397 = vperm.xlu0 %396, %v78
    %v398 = vpop.permute.xlu0 %397
    %399 = vset.pattern.permute.xlu0 1
    %400 = vperm.xlu0 %399, %v79
    %v401 = vpop.permute.xlu0 %400
    %402 = vset.pattern.permute.xlu0 1
    %403 = vperm.xlu0 %402, %v80
    %v404 = vpop.permute.xlu0 %403
    %405 = vset.pattern.permute.xlu0 1
    %406 = vperm.xlu0 %405, %v81
    %v407 = vpop.permute.xlu0 %406
    %408 = vset.pattern.permute.xlu0 1
    %409 = vperm.xlu0 %408, %v82
    %v410 = vpop.permute.xlu0 %409
    %411 = vset.pattern.permute.xlu0 1
    %412 = vperm.xlu0 %411, %v83
    %v413 = vpop.permute.xlu0 %412
    %414 = vset.pattern.permute.xlu0 1
    %415 = vperm.xlu0 %414, %v84
    %v416 = vpop.permute.xlu0 %415
    %417 = vset.pattern.permute.xlu0 1
    %418 = vperm.xlu0 %417, %v85
    %v419 = vpop.permute.xlu0 %418
    %420 = vset.pattern.permute.xlu0 1
    %421 = vperm.xlu0 %420, %v86
    %v422 = vpop.permute.xlu0 %421
    %423 = vset.pattern.permute.xlu0 1
    %424 = vperm.xlu0 %423, %v87
    %v425 = vpop.permute.xlu0 %424
    %vm426 = vcmp.eq.s32.totalorder %v121, %v332
    %vm427 = vcmp.eq.s32.totalorder %v121, %v335
    %vm428 = vcmp.eq.s32.totalorder %v121, %v338
    %vm429 = vcmp.eq.s32.totalorder %v121, %v341
    %vm430 = vcmp.eq.s32.totalorder %v121, %v344
    %vm431 = vcmp.eq.s32.totalorder %v121, %v347
    %vm432 = vcmp.eq.s32.totalorder %v121, %v350
    %vm433 = vcmp.eq.s32.totalorder %v121, %v353
    %vm434 = vcmp.eq.s32.totalorder %v121, %v356
    %vm435 = vcmp.eq.s32.totalorder %v121, %v359
    %vm436 = vcmp.eq.s32.totalorder %v121, %v362
    %vm437 = vcmp.eq.s32.totalorder %v121, %v365
    %vm438 = vcmp.eq.s32.totalorder %v121, %v368
    %vm439 = vcmp.eq.s32.totalorder %v121, %v371
    %vm440 = vcmp.eq.s32.totalorder %v121, %v374
    %vm441 = vcmp.eq.s32.totalorder %v121, %v377
    %vm442 = vcmp.eq.s32.totalorder %v121, %v380
    %vm443 = vcmp.eq.s32.totalorder %v121, %v383
    %vm444 = vcmp.eq.s32.totalorder %v121, %v386
    %vm445 = vcmp.eq.s32.totalorder %v121, %v389
    %vm446 = vcmp.eq.s32.totalorder %v121, %v392
    %vm447 = vcmp.eq.s32.totalorder %v121, %v395
    %vm448 = vcmp.eq.s32.totalorder %v121, %v398
    %vm449 = vcmp.eq.s32.totalorder %v121, %v401
    %vm450 = vcmp.eq.s32.totalorder %v121, %v404
    %vm451 = vcmp.eq.s32.totalorder %v121, %v407
    %vm452 = vcmp.eq.s32.totalorder %v121, %v410
    %vm453 = vcmp.eq.s32.totalorder %v121, %v413
    %vm454 = vcmp.eq.s32.totalorder %v121, %v416
    %vm455 = vcmp.eq.s32.totalorder %v121, %v419
    %vm456 = vcmp.eq.s32.totalorder %v121, %v422
    %vm457 = vcmp.eq.s32.totalorder %v121, %v425
    %v458 = vsel %vm426, 1, 0
    %v459 = vsel %vm427, 1, 0
    %v460 = vsel %vm428, 1, 0
    %v461 = vsel %vm429, 1, 0
    %v462 = vsel %vm430, 1, 0
    %v463 = vsel %vm431, 1, 0
    %v464 = vsel %vm432, 1, 0
    %v465 = vsel %vm433, 1, 0
    %v466 = vsel %vm434, 1, 0
    %v467 = vsel %vm435, 1, 0
    %v468 = vsel %vm436, 1, 0
    %v469 = vsel %vm437, 1, 0
    %v470 = vsel %vm438, 1, 0
    %v471 = vsel %vm439, 1, 0
    %v472 = vsel %vm440, 1, 0
    %v473 = vsel %vm441, 1, 0
    %v474 = vsel %vm442, 1, 0
    %v475 = vsel %vm443, 1, 0
    %v476 = vsel %vm444, 1, 0
    %v477 = vsel %vm445, 1, 0
    %v478 = vsel %vm446, 1, 0
    %v479 = vsel %vm447, 1, 0
    %v480 = vsel %vm448, 1, 0
    %v481 = vsel %vm449, 1, 0
    %v482 = vsel %vm450, 1, 0
    %v483 = vsel %vm451, 1, 0
    %v484 = vsel %vm452, 1, 0
    %v485 = vsel %vm453, 1, 0
    %v486 = vsel %vm454, 1, 0
    %v487 = vsel %vm455, 1, 0
    %v488 = vsel %vm456, 1, 0
    %v489 = vsel %vm457, 1, 0
    %v490 = vcvt.s32.f32 %v458
    %v491 = vcvt.s32.f32 %v459
    %v492 = vcvt.s32.f32 %v460
    %v493 = vcvt.s32.f32 %v461
    %v494 = vcvt.s32.f32 %v462
    %v495 = vcvt.s32.f32 %v463
    %v496 = vcvt.s32.f32 %v464
    %v497 = vcvt.s32.f32 %v465
    %v498 = vcvt.s32.f32 %v466
    %v499 = vcvt.s32.f32 %v467
    %v500 = vcvt.s32.f32 %v468
    %v501 = vcvt.s32.f32 %v469
    %v502 = vcvt.s32.f32 %v470
    %v503 = vcvt.s32.f32 %v471
    %v504 = vcvt.s32.f32 %v472
    %v505 = vcvt.s32.f32 %v473
    %v506 = vcvt.s32.f32 %v474
    %v507 = vcvt.s32.f32 %v475
    %v508 = vcvt.s32.f32 %v476
    %v509 = vcvt.s32.f32 %v477
    %v510 = vcvt.s32.f32 %v478
    %v511 = vcvt.s32.f32 %v479
    %v512 = vcvt.s32.f32 %v480
    %v513 = vcvt.s32.f32 %v481
    %v514 = vcvt.s32.f32 %v482
    %v515 = vcvt.s32.f32 %v483
    %v516 = vcvt.s32.f32 %v484
    %v517 = vcvt.s32.f32 %v485
    %v518 = vcvt.s32.f32 %v486
    %v519 = vcvt.s32.f32 %v487
    %v520 = vcvt.s32.f32 %v488
    %v521 = vcvt.s32.f32 %v489
    %v522 = vpack.c.bf16 %v491, %v490
    %v523 = vpack.c.bf16 %v493, %v492
    %v524 = vpack.c.bf16 %v495, %v494
    %v525 = vpack.c.bf16 %v497, %v496
    %v526 = vpack.c.bf16 %v499, %v498
    %v527 = vpack.c.bf16 %v501, %v500
    %v528 = vpack.c.bf16 %v503, %v502
    %v529 = vpack.c.bf16 %v505, %v504
    %v530 = vpack.c.bf16 %v507, %v506
    %v531 = vpack.c.bf16 %v509, %v508
    %v532 = vpack.c.bf16 %v511, %v510
    %v533 = vpack.c.bf16 %v513, %v512
    %v534 = vpack.c.bf16 %v515, %v514
    %v535 = vpack.c.bf16 %v517, %v516
    %v536 = vpack.c.bf16 %v519, %v518
    %v537 = vpack.c.bf16 %v521, %v520
    %v538 = vld [vmem:[%s1] sm:$0xf]
    %v539 = vld [vmem:[%s2] sm:$0xf]
    %vm540 = vcmask 64512
    %v542 = vsel %vm540, %v522, 0
    %v545 = vsel %vm540, %v523, 0
    %v548 = vsel %vm540, %v524, 0
    %v551 = vsel %vm540, %v525, 0
    %v554 = vsel %vm540, %v526, 0
    %v557 = vsel %vm540, %v527, 0
    %v560 = vsel %vm540, %v528, 0
    %v563 = vsel %vm540, %v529, 0
    %v566 = vsel %vm540, %v530, 0
    %v569 = vsel %vm540, %v531, 0
    %v572 = vsel %vm540, %v532, 0
    %v575 = vsel %vm540, %v533, 0
    %v578 = vsel %vm540, %v534, 0
    %v581 = vsel %vm540, %v535, 0
    %v584 = vsel %vm540, %v536, 0
    %v587 = vsel %vm540, %v537, 0
    %vm589 = vcmask 1043456
    %v591 = vsel %vm589, %v539, 0
    %593 = vmatprep.subr.bf16.mxu0 0
    %594 = vmatpush1.bf16.msra.mxu0 0
    %595 = vmatprep.subr.bf16.mxu0 0
    %596 = vmatpush1.bf16.msra.mxu0 0
    %597 = vmatprep.subr.bf16.mxu0 0
    %598 = vmatpush1.bf16.msra.mxu0 0
    %599 = vmatprep.subr.bf16.mxu0 0
    %600 = vmatpush1.bf16.msra.mxu0 0
    %601 = vmatprep.subr.bf16.mxu0 0
    %602 = vmatpush1.bf16.msra.mxu0 0
    %603 = vmatprep.subr.bf16.mxu0 0
    %604 = vmatpush1.bf16.msra.mxu0 0
    %605 = vmatprep.subr.bf16.mxu0 0
    %606 = vmatpush1.bf16.msra.mxu0 0
    %607 = vmatprep.subr.bf16.mxu0 0
    %608 = vmatpush1.bf16.msra.mxu0 %v591
    %609 = vmatprep.subr.bf16.mxu0 0
    %610 = vmatpush2.bf16.msra.mxu0 0
    %611 = vmatprep.subr.bf16.mxu0 0
    %612 = vmatpush2.bf16.msra.mxu0 0
    %613 = vmatprep.subr.bf16.mxu0 0
    %614 = vmatpush2.bf16.msra.mxu0 0
    %615 = vmatprep.subr.bf16.mxu0 0
    %616 = vmatpush2.bf16.msra.mxu0 0
    %617 = vmatprep.subr.bf16.mxu0 0
    %618 = vmatpush2.bf16.msra.mxu0 0
    %619 = vmatprep.subr.bf16.mxu0 0
    %620 = vmatpush2.bf16.msra.mxu0 0
    %621 = vmatprep.subr.bf16.mxu0 0
    %622 = vmatpush2.bf16.msra.mxu0 0
    %623 = vmatprep.subr.bf16.mxu0 0
    %624 = vmatpush2.bf16.msra.mxu0 0
    %625 = vmatprep.mubr.bf16.mxu0 0
    %626 = vmatmul.mubr.bf16.gmra.mxu0 %v542
    %v627 = vpop.f32.mrf.mxu0
    %v628 = vadd.f32 0.0, %v627
    %v629 = vpop.f32.mrf.mxu0
    %v630 = vpop.f32.mrf.mxu0
    %v631 = vadd.f32 0.0, %v630
    %v632 = vpop.f32.mrf.mxu0
    %633 = vmatprep.mubr.bf16.mxu0 0
    %634 = vmatmul.mubr.bf16.gmra.mxu0 %v545
    %v635 = vpop.f32.mrf.mxu0
    %v636 = vadd.f32 0.0, %v635
    %v637 = vpop.f32.mrf.mxu0
    %v638 = vpop.f32.mrf.mxu0
    %v639 = vadd.f32 0.0, %v638
    %v640 = vpop.f32.mrf.mxu0
    %641 = vmatprep.mubr.bf16.mxu0 0
    %642 = vmatmul.mubr.bf16.gmra.mxu0 %v548
    %v643 = vpop.f32.mrf.mxu0
    %v644 = vadd.f32 0.0, %v643
    %v645 = vpop.f32.mrf.mxu0
    %v646 = vpop.f32.mrf.mxu0
    %v647 = vadd.f32 0.0, %v646
    %v648 = vpop.f32.mrf.mxu0
    %649 = vmatprep.mubr.bf16.mxu0 0
    %650 = vmatmul.mubr.bf16.gmra.mxu0 %v551
    %v651 = vpop.f32.mrf.mxu0
    %v652 = vadd.f32 0.0, %v651
    %v653 = vpop.f32.mrf.mxu0
    %v654 = vpop.f32.mrf.mxu0
    %v655 = vadd.f32 0.0, %v654
    %v656 = vpop.f32.mrf.mxu0
    %657 = vmatprep.mubr.bf16.mxu0 0
    %658 = vmatmul.mubr.bf16.gmra.mxu0 %v554
    %v659 = vpop.f32.mrf.mxu0
    %v660 = vadd.f32 0.0, %v659
    %v661 = vpop.f32.mrf.mxu0
    %v662 = vpop.f32.mrf.mxu0
    %v663 = vadd.f32 0.0, %v662
    %v664 = vpop.f32.mrf.mxu0
    %665 = vmatprep.mubr.bf16.mxu0 0
    %666 = vmatmul.mubr.bf16.gmra.mxu0 %v557
    %v667 = vpop.f32.mrf.mxu0
    %v668 = vadd.f32 0.0, %v667
    %v669 = vpop.f32.mrf.mxu0
    %v670 = vpop.f32.mrf.mxu0
    %v671 = vadd.f32 0.0, %v670
    %v672 = vpop.f32.mrf.mxu0
    %673 = vmatprep.mubr.bf16.mxu0 0
    %674 = vmatmul.mubr.bf16.gmra.mxu0 %v560
    %v675 = vpop.f32.mrf.mxu0
    %v676 = vadd.f32 0.0, %v675
    %v677 = vpop.f32.mrf.mxu0
    %v678 = vpop.f32.mrf.mxu0
    %v679 = vadd.f32 0.0, %v678
    %v680 = vpop.f32.mrf.mxu0
    %681 = vmatprep.mubr.bf16.mxu0 0
    %682 = vmatmul.mubr.bf16.gmra.mxu0 %v563
    %v683 = vpop.f32.mrf.mxu0
    %v684 = vadd.f32 0.0, %v683
    %v685 = vpop.f32.mrf.mxu0
    %v686 = vpop.f32.mrf.mxu0
    %v687 = vadd.f32 0.0, %v686
    %v688 = vpop.f32.mrf.mxu0
    %689 = vmatprep.mubr.bf16.mxu0 0
    %690 = vmatmul.mubr.bf16.gmra.mxu0 %v566
    %v691 = vpop.f32.mrf.mxu0
    %v692 = vadd.f32 0.0, %v691
    %v693 = vpop.f32.mrf.mxu0
    %v694 = vpop.f32.mrf.mxu0
    %v695 = vadd.f32 0.0, %v694
    %v696 = vpop.f32.mrf.mxu0
    %697 = vmatprep.mubr.bf16.mxu0 0
    %698 = vmatmul.mubr.bf16.gmra.mxu0 %v569
    %v699 = vpop.f32.mrf.mxu0
    %v700 = vadd.f32 0.0, %v699
    %v701 = vpop.f32.mrf.mxu0
    %v702 = vpop.f32.mrf.mxu0
    %v703 = vadd.f32 0.0, %v702
    %v704 = vpop.f32.mrf.mxu0
    %705 = vmatprep.mubr.bf16.mxu0 0
    %706 = vmatmul.mubr.bf16.gmra.mxu0 %v572
    %v707 = vpop.f32.mrf.mxu0
    %v708 = vadd.f32 0.0, %v707
    %v709 = vpop.f32.mrf.mxu0
    %v710 = vpop.f32.mrf.mxu0
    %v711 = vadd.f32 0.0, %v710
    %v712 = vpop.f32.mrf.mxu0
    %713 = vmatprep.mubr.bf16.mxu0 0
    %714 = vmatmul.mubr.bf16.gmra.mxu0 %v575
    %v715 = vpop.f32.mrf.mxu0
    %v716 = vadd.f32 0.0, %v715
    %v717 = vpop.f32.mrf.mxu0
    %v718 = vpop.f32.mrf.mxu0
    %v719 = vadd.f32 0.0, %v718
    %v720 = vpop.f32.mrf.mxu0
    %721 = vmatprep.mubr.bf16.mxu0 0
    %722 = vmatmul.mubr.bf16.gmra.mxu0 %v578
    %v723 = vpop.f32.mrf.mxu0
    %v724 = vadd.f32 0.0, %v723
    %v725 = vpop.f32.mrf.mxu0
    %v726 = vpop.f32.mrf.mxu0
    %v727 = vadd.f32 0.0, %v726
    %v728 = vpop.f32.mrf.mxu0
    %729 = vmatprep.mubr.bf16.mxu0 0
    %730 = vmatmul.mubr.bf16.gmra.mxu0 %v581
    %v731 = vpop.f32.mrf.mxu0
    %v732 = vadd.f32 0.0, %v731
    %v733 = vpop.f32.mrf.mxu0
    %v734 = vpop.f32.mrf.mxu0
    %v735 = vadd.f32 0.0, %v734
    %v736 = vpop.f32.mrf.mxu0
    %737 = vmatprep.mubr.bf16.mxu0 0
    %738 = vmatmul.mubr.bf16.gmra.mxu0 %v584
    %v739 = vpop.f32.mrf.mxu0
    %v740 = vadd.f32 0.0, %v739
    %v741 = vpop.f32.mrf.mxu0
    %v742 = vpop.f32.mrf.mxu0
    %v743 = vadd.f32 0.0, %v742
    %v744 = vpop.f32.mrf.mxu0
    %745 = vmatprep.mubr.bf16.mxu0 0
    %746 = vmatmul.mubr.bf16.gmra.mxu0 %v587
    %v747 = vpop.f32.mrf.mxu0
    %v748 = vadd.f32 0.0, %v747
    %v749 = vpop.f32.mrf.mxu0
    %v750 = vpop.f32.mrf.mxu0
    %v751 = vadd.f32 0.0, %v750
    %v752 = vpop.f32.mrf.mxu0
    %753 = vdwg.mxu0
    %v755 = vsel %vm540, %v314, 0
    %v758 = vsel %vm540, %v315, 0
    %v761 = vsel %vm540, %v316, 0
    %v764 = vsel %vm540, %v317, 0
    %v767 = vsel %vm540, %v318, 0
    %v770 = vsel %vm540, %v319, 0
    %v773 = vsel %vm540, %v320, 0
    %v776 = vsel %vm540, %v321, 0
    %v779 = vsel %vm540, %v322, 0
    %v782 = vsel %vm540, %v323, 0
    %v785 = vsel %vm540, %v324, 0
    %v788 = vsel %vm540, %v325, 0
    %v791 = vsel %vm540, %v326, 0
    %v794 = vsel %vm540, %v327, 0
    %v797 = vsel %vm540, %v328, 0
    %v800 = vsel %vm540, %v329, 0
    %v803 = vsel %vm589, %v538, 0
    %805 = vmatprep.subr.bf16.mxu0 0
    %806 = vmatpush1.bf16.msra.mxu0 0
    %807 = vmatprep.subr.bf16.mxu0 0
    %808 = vmatpush1.bf16.msra.mxu0 0
    %809 = vmatprep.subr.bf16.mxu0 0
    %810 = vmatpush1.bf16.msra.mxu0 0
    %811 = vmatprep.subr.bf16.mxu0 0
    %812 = vmatpush1.bf16.msra.mxu0 0
    %813 = vmatprep.subr.bf16.mxu0 0
    %814 = vmatpush1.bf16.msra.mxu0 0
    %815 = vmatprep.subr.bf16.mxu0 0
    %816 = vmatpush1.bf16.msra.mxu0 0
    %817 = vmatprep.subr.bf16.mxu0 0
    %818 = vmatpush1.bf16.msra.mxu0 0
    %819 = vmatprep.subr.bf16.mxu0 0
    %820 = vmatpush1.bf16.msra.mxu0 %v803
    %821 = vmatprep.subr.bf16.mxu0 0
    %822 = vmatpush2.bf16.msra.mxu0 0
    %823 = vmatprep.subr.bf16.mxu0 0
    %824 = vmatpush2.bf16.msra.mxu0 0
    %825 = vmatprep.subr.bf16.mxu0 0
    %826 = vmatpush2.bf16.msra.mxu0 0
    %827 = vmatprep.subr.bf16.mxu0 0
    %828 = vmatpush2.bf16.msra.mxu0 0
    %829 = vmatprep.subr.bf16.mxu0 0
    %830 = vmatpush2.bf16.msra.mxu0 0
    %831 = vmatprep.subr.bf16.mxu0 0
    %832 = vmatpush2.bf16.msra.mxu0 0
    %833 = vmatprep.subr.bf16.mxu0 0
    %834 = vmatpush2.bf16.msra.mxu0 0
    %835 = vmatprep.subr.bf16.mxu0 0
    %836 = vmatpush2.bf16.msra.mxu0 0
    %837 = vmatprep.mubr.bf16.mxu0 0
    %838 = vmatmul.mubr.bf16.gmra.mxu0 %v755
    %v839 = vpop.f32.mrf.mxu0
    %v840 = vadd.f32 %v628, %v839
    %v841 = vpop.f32.mrf.mxu0
    %v842 = vpop.f32.mrf.mxu0
    %v843 = vadd.f32 %v631, %v842
    %v844 = vpop.f32.mrf.mxu0
    %845 = vmatprep.mubr.bf16.mxu0 0
    %846 = vmatmul.mubr.bf16.gmra.mxu0 %v758
    %v847 = vpop.f32.mrf.mxu0
    %v848 = vadd.f32 %v636, %v847
    %v849 = vpop.f32.mrf.mxu0
    %v850 = vpop.f32.mrf.mxu0
    %v851 = vadd.f32 %v639, %v850
    %v852 = vpop.f32.mrf.mxu0
    %853 = vmatprep.mubr.bf16.mxu0 0
    %854 = vmatmul.mubr.bf16.gmra.mxu0 %v761
    %v855 = vpop.f32.mrf.mxu0
    %v856 = vadd.f32 %v644, %v855
    %v857 = vpop.f32.mrf.mxu0
    %v858 = vpop.f32.mrf.mxu0
    %v859 = vadd.f32 %v647, %v858
    %v860 = vpop.f32.mrf.mxu0
    %861 = vmatprep.mubr.bf16.mxu0 0
    %862 = vmatmul.mubr.bf16.gmra.mxu0 %v764
    %v863 = vpop.f32.mrf.mxu0
    %v864 = vadd.f32 %v652, %v863
    %v865 = vpop.f32.mrf.mxu0
    %v866 = vpop.f32.mrf.mxu0
    %v867 = vadd.f32 %v655, %v866
    %v868 = vpop.f32.mrf.mxu0
    %869 = vmatprep.mubr.bf16.mxu0 0
    %870 = vmatmul.mubr.bf16.gmra.mxu0 %v767
    %v871 = vpop.f32.mrf.mxu0
    %v872 = vadd.f32 %v660, %v871
    %v873 = vpop.f32.mrf.mxu0
    %v874 = vpop.f32.mrf.mxu0
    %v875 = vadd.f32 %v663, %v874
    %v876 = vpop.f32.mrf.mxu0
    %877 = vmatprep.mubr.bf16.mxu0 0
    %878 = vmatmul.mubr.bf16.gmra.mxu0 %v770
    %v879 = vpop.f32.mrf.mxu0
    %v880 = vadd.f32 %v668, %v879
    %v881 = vpop.f32.mrf.mxu0
    %v882 = vpop.f32.mrf.mxu0
    %v883 = vadd.f32 %v671, %v882
    %v884 = vpop.f32.mrf.mxu0
    %885 = vmatprep.mubr.bf16.mxu0 0
    %886 = vmatmul.mubr.bf16.gmra.mxu0 %v773
    %v887 = vpop.f32.mrf.mxu0
    %v888 = vadd.f32 %v676, %v887
    %v889 = vpop.f32.mrf.mxu0
    %v890 = vpop.f32.mrf.mxu0
    %v891 = vadd.f32 %v679, %v890
    %v892 = vpop.f32.mrf.mxu0
    %893 = vmatprep.mubr.bf16.mxu0 0
    %894 = vmatmul.mubr.bf16.gmra.mxu0 %v776
    %v895 = vpop.f32.mrf.mxu0
    %v896 = vadd.f32 %v684, %v895
    %v897 = vpop.f32.mrf.mxu0
    %v898 = vpop.f32.mrf.mxu0
    %v899 = vadd.f32 %v687, %v898
    %v900 = vpop.f32.mrf.mxu0
    %901 = vmatprep.mubr.bf16.mxu0 0
    %902 = vmatmul.mubr.bf16.gmra.mxu0 %v779
    %v903 = vpop.f32.mrf.mxu0
    %v904 = vadd.f32 %v692, %v903
    %v905 = vpop.f32.mrf.mxu0
    %v906 = vpop.f32.mrf.mxu0
    %v907 = vadd.f32 %v695, %v906
    %v908 = vpop.f32.mrf.mxu0
    %909 = vmatprep.mubr.bf16.mxu0 0
    %910 = vmatmul.mubr.bf16.gmra.mxu0 %v782
    %v911 = vpop.f32.mrf.mxu0
    %v912 = vadd.f32 %v700, %v911
    %v913 = vpop.f32.mrf.mxu0
    %v914 = vpop.f32.mrf.mxu0
    %v915 = vadd.f32 %v703, %v914
    %v916 = vpop.f32.mrf.mxu0
    %917 = vmatprep.mubr.bf16.mxu0 0
    %918 = vmatmul.mubr.bf16.gmra.mxu0 %v785
    %v919 = vpop.f32.mrf.mxu0
    %v920 = vadd.f32 %v708, %v919
    %v921 = vpop.f32.mrf.mxu0
    %v922 = vpop.f32.mrf.mxu0
    %v923 = vadd.f32 %v711, %v922
    %v924 = vpop.f32.mrf.mxu0
    %925 = vmatprep.mubr.bf16.mxu0 0
    %926 = vmatmul.mubr.bf16.gmra.mxu0 %v788
    %v927 = vpop.f32.mrf.mxu0
    %v928 = vadd.f32 %v716, %v927
    %v929 = vpop.f32.mrf.mxu0
    %v930 = vpop.f32.mrf.mxu0
    %v931 = vadd.f32 %v719, %v930
    %v932 = vpop.f32.mrf.mxu0
    %933 = vmatprep.mubr.bf16.mxu0 0
    %934 = vmatmul.mubr.bf16.gmra.mxu0 %v791
    %v935 = vpop.f32.mrf.mxu0
    %v936 = vadd.f32 %v724, %v935
    %v937 = vpop.f32.mrf.mxu0
    %v938 = vpop.f32.mrf.mxu0
    %v939 = vadd.f32 %v727, %v938
    %v940 = vpop.f32.mrf.mxu0
    %941 = vmatprep.mubr.bf16.mxu0 0
    %942 = vmatmul.mubr.bf16.gmra.mxu0 %v794
    %v943 = vpop.f32.mrf.mxu0
    %v944 = vadd.f32 %v732, %v943
    %v945 = vpop.f32.mrf.mxu0
    %v946 = vpop.f32.mrf.mxu0
    %v947 = vadd.f32 %v735, %v946
    %v948 = vpop.f32.mrf.mxu0
    %949 = vmatprep.mubr.bf16.mxu0 0
    %950 = vmatmul.mubr.bf16.gmra.mxu0 %v797
    %v951 = vpop.f32.mrf.mxu0
    %v952 = vadd.f32 %v740, %v951
    %v953 = vpop.f32.mrf.mxu0
    %v954 = vpop.f32.mrf.mxu0
    %v955 = vadd.f32 %v743, %v954
    %v956 = vpop.f32.mrf.mxu0
    %957 = vmatprep.mubr.bf16.mxu0 0
    %958 = vmatmul.mubr.bf16.gmra.mxu0 %v800
    %v959 = vpop.f32.mrf.mxu0
    %v960 = vadd.f32 %v748, %v959
    %v961 = vpop.f32.mrf.mxu0
    %v962 = vpop.f32.mrf.mxu0
    %v963 = vadd.f32 %v751, %v962
    %v964 = vpop.f32.mrf.mxu0
    %965 = vdwg.mxu0
    %v966 = vld [vmem:[%s3] sm:$0x1]
    %967 = vset.pattern.permute.xlu0 6
    %968 = vperm.xlu0 %967, %v56
    %v969 = vpop.permute.xlu0 %968
    %971 = vset.pattern.permute.xlu0 6
    %972 = vperm.xlu0 %971, %v57
    %v973 = vpop.permute.xlu0 %972
    %975 = vset.pattern.permute.xlu0 6
    %976 = vperm.xlu0 %975, %v58
    %v977 = vpop.permute.xlu0 %976
    %979 = vset.pattern.permute.xlu0 6
    %980 = vperm.xlu0 %979, %v59
    %v981 = vpop.permute.xlu0 %980
    %983 = vset.pattern.permute.xlu0 6
    %984 = vperm.xlu0 %983, %v60
    %v985 = vpop.permute.xlu0 %984
    %987 = vset.pattern.permute.xlu0 6
    %988 = vperm.xlu0 %987, %v61
    %v989 = vpop.permute.xlu0 %988
    %991 = vset.pattern.permute.xlu0 6
    %992 = vperm.xlu0 %991, %v62
    %v993 = vpop.permute.xlu0 %992
    %995 = vset.pattern.permute.xlu0 6
    %996 = vperm.xlu0 %995, %v63
    %v997 = vpop.permute.xlu0 %996
    %999 = vset.pattern.permute.xlu0 6
    %1000 = vperm.xlu0 %999, %v64
    %v1001 = vpop.permute.xlu0 %1000
    %1003 = vset.pattern.permute.xlu0 6
    %1004 = vperm.xlu0 %1003, %v65
    %v1005 = vpop.permute.xlu0 %1004
    %1007 = vset.pattern.permute.xlu0 6
    %1008 = vperm.xlu0 %1007, %v66
    %v1009 = vpop.permute.xlu0 %1008
    %1011 = vset.pattern.permute.xlu0 6
    %1012 = vperm.xlu0 %1011, %v67
    %v1013 = vpop.permute.xlu0 %1012
    %1015 = vset.pattern.permute.xlu0 6
    %1016 = vperm.xlu0 %1015, %v68
    %v1017 = vpop.permute.xlu0 %1016
    %1019 = vset.pattern.permute.xlu0 6
    %1020 = vperm.xlu0 %1019, %v69
    %v1021 = vpop.permute.xlu0 %1020
    %1023 = vset.pattern.permute.xlu0 6
    %1024 = vperm.xlu0 %1023, %v70
    %v1025 = vpop.permute.xlu0 %1024
    %1027 = vset.pattern.permute.xlu0 6
    %1028 = vperm.xlu0 %1027, %v71
    %v1029 = vpop.permute.xlu0 %1028
    %1031 = vset.pattern.permute.xlu0 6
    %1032 = vperm.xlu0 %1031, %v72
    %v1033 = vpop.permute.xlu0 %1032
    %1035 = vset.pattern.permute.xlu0 6
    %1036 = vperm.xlu0 %1035, %v73
    %v1037 = vpop.permute.xlu0 %1036
    %1039 = vset.pattern.permute.xlu0 6
    %1040 = vperm.xlu0 %1039, %v74
    %v1041 = vpop.permute.xlu0 %1040
    %1043 = vset.pattern.permute.xlu0 6
    %1044 = vperm.xlu0 %1043, %v75
    %v1045 = vpop.permute.xlu0 %1044
    %1047 = vset.pattern.permute.xlu0 6
    %1048 = vperm.xlu0 %1047, %v76
    %v1049 = vpop.permute.xlu0 %1048
    %1051 = vset.pattern.permute.xlu0 6
    %1052 = vperm.xlu0 %1051, %v77
    %v1053 = vpop.permute.xlu0 %1052
    %1055 = vset.pattern.permute.xlu0 6
    %1056 = vperm.xlu0 %1055, %v78
    %v1057 = vpop.permute.xlu0 %1056
    %1059 = vset.pattern.permute.xlu0 6
    %1060 = vperm.xlu0 %1059, %v79
    %v1061 = vpop.permute.xlu0 %1060
    %1063 = vset.pattern.permute.xlu0 6
    %1064 = vperm.xlu0 %1063, %v80
    %v1065 = vpop.permute.xlu0 %1064
    %1067 = vset.pattern.permute.xlu0 6
    %1068 = vperm.xlu0 %1067, %v81
    %v1069 = vpop.permute.xlu0 %1068
    %1071 = vset.pattern.permute.xlu0 6
    %1072 = vperm.xlu0 %1071, %v82
    %v1073 = vpop.permute.xlu0 %1072
    %1075 = vset.pattern.permute.xlu0 6
    %1076 = vperm.xlu0 %1075, %v83
    %v1077 = vpop.permute.xlu0 %1076
    %1079 = vset.pattern.permute.xlu0 6
    %1080 = vperm.xlu0 %1079, %v84
    %v1081 = vpop.permute.xlu0 %1080
    %1083 = vset.pattern.permute.xlu0 6
    %1084 = vperm.xlu0 %1083, %v85
    %v1085 = vpop.permute.xlu0 %1084
    %1087 = vset.pattern.permute.xlu0 6
    %1088 = vperm.xlu0 %1087, %v86
    %v1089 = vpop.permute.xlu0 %1088
    %1091 = vset.pattern.permute.xlu0 6
    %1092 = vperm.xlu0 %1091, %v87
    %v1093 = vpop.permute.xlu0 %1092
    %v1096 = vlaneseq
    %v1097 = vshrl.u32 %v1096, 7
    %v1098 = vsub.s32 0, %v1097
    %v1099 = vrot.slane %v966, %v1098
    %v1101 = vmul.f32 %v969, %v1099
    %v1102 = vmul.f32 %v973, %v1099
    %v1103 = vmul.f32 %v977, %v1099
    %v1104 = vmul.f32 %v981, %v1099
    %v1105 = vmul.f32 %v985, %v1099
    %v1106 = vmul.f32 %v989, %v1099
    %v1107 = vmul.f32 %v993, %v1099
    %v1108 = vmul.f32 %v997, %v1099
    %v1109 = vmul.f32 %v1001, %v1099
    %v1110 = vmul.f32 %v1005, %v1099
    %v1111 = vmul.f32 %v1009, %v1099
    %v1112 = vmul.f32 %v1013, %v1099
    %v1113 = vmul.f32 %v1017, %v1099
    %v1114 = vmul.f32 %v1021, %v1099
    %v1115 = vmul.f32 %v1025, %v1099
    %v1116 = vmul.f32 %v1029, %v1099
    %v1117 = vmul.f32 %v1033, %v1099
    %v1118 = vmul.f32 %v1037, %v1099
    %v1119 = vmul.f32 %v1041, %v1099
    %v1120 = vmul.f32 %v1045, %v1099
    %v1121 = vmul.f32 %v1049, %v1099
    %v1122 = vmul.f32 %v1053, %v1099
    %v1123 = vmul.f32 %v1057, %v1099
    %v1124 = vmul.f32 %v1061, %v1099
    %v1125 = vmul.f32 %v1065, %v1099
    %v1126 = vmul.f32 %v1069, %v1099
    %v1127 = vmul.f32 %v1073, %v1099
    %v1128 = vmul.f32 %v1077, %v1099
    %v1129 = vmul.f32 %v1081, %v1099
    %v1130 = vmul.f32 %v1085, %v1099
    %v1131 = vmul.f32 %v1089, %v1099
    %v1132 = vmul.f32 %v1093, %v1099
    %v1133 = vadd.f32 %v840, %v1101
    %v1134 = vadd.f32 %v843, %v1102
    %v1135 = vadd.f32 %v848, %v1103
    %v1136 = vadd.f32 %v851, %v1104
    %v1137 = vadd.f32 %v856, %v1105
    %v1138 = vadd.f32 %v859, %v1106
    %v1139 = vadd.f32 %v864, %v1107
    %v1140 = vadd.f32 %v867, %v1108
    %v1141 = vadd.f32 %v872, %v1109
    %v1142 = vadd.f32 %v875, %v1110
    %v1143 = vadd.f32 %v880, %v1111
    %v1144 = vadd.f32 %v883, %v1112
    %v1145 = vadd.f32 %v888, %v1113
    %v1146 = vadd.f32 %v891, %v1114
    %v1147 = vadd.f32 %v896, %v1115
    %v1148 = vadd.f32 %v899, %v1116
    %v1149 = vadd.f32 %v904, %v1117
    %v1150 = vadd.f32 %v907, %v1118
    %v1151 = vadd.f32 %v912, %v1119
    %v1152 = vadd.f32 %v915, %v1120
    %v1153 = vadd.f32 %v920, %v1121
    %v1154 = vadd.f32 %v923, %v1122
    %v1155 = vadd.f32 %v928, %v1123
    %v1156 = vadd.f32 %v931, %v1124
    %v1157 = vadd.f32 %v936, %v1125
    %v1158 = vadd.f32 %v939, %v1126
    %v1159 = vadd.f32 %v944, %v1127
    %v1160 = vadd.f32 %v947, %v1128
    %v1161 = vadd.f32 %v952, %v1129
    %v1162 = vadd.f32 %v955, %v1130
    %v1163 = vadd.f32 %v960, %v1131
    %v1164 = vadd.f32 %v963, %v1132
    %v1165 = vxor.u32 %v1133, 2147483648
    %v1166 = vxor.u32 %v1134, 2147483648
    %v1167 = vxor.u32 %v1135, 2147483648
    %v1168 = vxor.u32 %v1136, 2147483648
    %v1169 = vxor.u32 %v1137, 2147483648
    %v1170 = vxor.u32 %v1138, 2147483648
    %v1171 = vxor.u32 %v1139, 2147483648
    %v1172 = vxor.u32 %v1140, 2147483648
    %v1173 = vxor.u32 %v1141, 2147483648
    %v1174 = vxor.u32 %v1142, 2147483648
    %v1175 = vxor.u32 %v1143, 2147483648
    %v1176 = vxor.u32 %v1144, 2147483648
    %v1177 = vxor.u32 %v1145, 2147483648
    %v1178 = vxor.u32 %v1146, 2147483648
    %v1179 = vxor.u32 %v1147, 2147483648
    %v1180 = vxor.u32 %v1148, 2147483648
    %v1181 = vxor.u32 %v1149, 2147483648
    %v1182 = vxor.u32 %v1150, 2147483648
    %v1183 = vxor.u32 %v1151, 2147483648
    %v1184 = vxor.u32 %v1152, 2147483648
    %v1185 = vxor.u32 %v1153, 2147483648
    %v1186 = vxor.u32 %v1154, 2147483648
    %v1187 = vxor.u32 %v1155, 2147483648
    %v1188 = vxor.u32 %v1156, 2147483648
    %v1189 = vxor.u32 %v1157, 2147483648
    %v1190 = vxor.u32 %v1158, 2147483648
    %v1191 = vxor.u32 %v1159, 2147483648
    %v1192 = vxor.u32 %v1160, 2147483648
    %v1193 = vxor.u32 %v1161, 2147483648
    %v1194 = vxor.u32 %v1162, 2147483648
    %v1195 = vxor.u32 %v1163, 2147483648
    %v1196 = vxor.u32 %v1164, 2147483648
    %v1197 = vmul.f32 %v1165, 1.442695
    %v1198 = vpow.pop %v1197
    %v1199 = vmul.f32 %v1166, 1.442695
    %v1200 = vpow.pop %v1199
    %v1201 = vmul.f32 %v1167, 1.442695
    %v1202 = vpow.pop %v1201
    %v1203 = vmul.f32 %v1168, 1.442695
    %v1204 = vpow.pop %v1203
    %v1205 = vmul.f32 %v1169, 1.442695
    %v1206 = vpow.pop %v1205
    %v1207 = vmul.f32 %v1170, 1.442695
    %v1208 = vpow.pop %v1207
    %v1209 = vmul.f32 %v1171, 1.442695
    %v1210 = vpow.pop %v1209
    %v1211 = vmul.f32 %v1172, 1.442695
    %v1212 = vpow.pop %v1211
    %v1213 = vmul.f32 %v1173, 1.442695
    %v1214 = vpow.pop %v1213
    %v1215 = vmul.f32 %v1174, 1.442695
    %v1216 = vpow.pop %v1215
    %v1217 = vmul.f32 %v1175, 1.442695
    %v1218 = vpow.pop %v1217
    %v1219 = vmul.f32 %v1176, 1.442695
    %v1220 = vpow.pop %v1219
    %v1221 = vmul.f32 %v1177, 1.442695
    %v1222 = vpow.pop %v1221
    %v1223 = vmul.f32 %v1178, 1.442695
    %v1224 = vpow.pop %v1223
    %v1225 = vmul.f32 %v1179, 1.442695
    %v1226 = vpow.pop %v1225
    %v1227 = vmul.f32 %v1180, 1.442695
    %v1228 = vpow.pop %v1227
    %v1229 = vmul.f32 %v1181, 1.442695
    %v1230 = vpow.pop %v1229
    %v1231 = vmul.f32 %v1182, 1.442695
    %v1232 = vpow.pop %v1231
    %v1233 = vmul.f32 %v1183, 1.442695
    %v1234 = vpow.pop %v1233
    %v1235 = vmul.f32 %v1184, 1.442695
    %v1236 = vpow.pop %v1235
    %v1237 = vmul.f32 %v1185, 1.442695
    %v1238 = vpow.pop %v1237
    %v1239 = vmul.f32 %v1186, 1.442695
    %v1240 = vpow.pop %v1239
    %v1241 = vmul.f32 %v1187, 1.442695
    %v1242 = vpow.pop %v1241
    %v1243 = vmul.f32 %v1188, 1.442695
    %v1244 = vpow.pop %v1243
    %v1245 = vmul.f32 %v1189, 1.442695
    %v1246 = vpow.pop %v1245
    %v1247 = vmul.f32 %v1190, 1.442695
    %v1248 = vpow.pop %v1247
    %v1249 = vmul.f32 %v1191, 1.442695
    %v1250 = vpow.pop %v1249
    %v1251 = vmul.f32 %v1192, 1.442695
    %v1252 = vpow.pop %v1251
    %v1253 = vmul.f32 %v1193, 1.442695
    %v1254 = vpow.pop %v1253
    %v1255 = vmul.f32 %v1194, 1.442695
    %v1256 = vpow.pop %v1255
    %v1257 = vmul.f32 %v1195, 1.442695
    %v1258 = vpow.pop %v1257
    %v1259 = vmul.f32 %v1196, 1.442695
    %v1260 = vpow.pop %v1259
    %v1261 = vadd.f32 %v1198, 1.0
    %v1262 = vadd.f32 %v1200, 1.0
    %v1263 = vadd.f32 %v1202, 1.0
    %v1264 = vadd.f32 %v1204, 1.0
    %v1265 = vadd.f32 %v1206, 1.0
    %v1266 = vadd.f32 %v1208, 1.0
    %v1267 = vadd.f32 %v1210, 1.0
    %v1268 = vadd.f32 %v1212, 1.0
    %v1269 = vadd.f32 %v1214, 1.0
    %v1270 = vadd.f32 %v1216, 1.0
    %v1271 = vadd.f32 %v1218, 1.0
    %v1272 = vadd.f32 %v1220, 1.0
    %v1273 = vadd.f32 %v1222, 1.0
    %v1274 = vadd.f32 %v1224, 1.0
    %v1275 = vadd.f32 %v1226, 1.0
    %v1276 = vadd.f32 %v1228, 1.0
    %v1277 = vadd.f32 %v1230, 1.0
    %v1278 = vadd.f32 %v1232, 1.0
    %v1279 = vadd.f32 %v1234, 1.0
    %v1280 = vadd.f32 %v1236, 1.0
    %v1281 = vadd.f32 %v1238, 1.0
    %v1282 = vadd.f32 %v1240, 1.0
    %v1283 = vadd.f32 %v1242, 1.0
    %v1284 = vadd.f32 %v1244, 1.0
    %v1285 = vadd.f32 %v1246, 1.0
    %v1286 = vadd.f32 %v1248, 1.0
    %v1287 = vadd.f32 %v1250, 1.0
    %v1288 = vadd.f32 %v1252, 1.0
    %v1289 = vadd.f32 %v1254, 1.0
    %v1290 = vadd.f32 %v1256, 1.0
    %v1291 = vadd.f32 %v1258, 1.0
    %v1292 = vadd.f32 %v1260, 1.0
    %v1293 = vrcp.pop %v1261
    %v1294 = vmul.f32 1.0, %v1293
    %v1295 = vrcp.pop %v1262
    %v1296 = vmul.f32 1.0, %v1295
    %v1297 = vrcp.pop %v1263
    %v1298 = vmul.f32 1.0, %v1297
    %v1299 = vrcp.pop %v1264
    %v1300 = vmul.f32 1.0, %v1299
    %v1301 = vrcp.pop %v1265
    %v1302 = vmul.f32 1.0, %v1301
    %v1303 = vrcp.pop %v1266
    %v1304 = vmul.f32 1.0, %v1303
    %v1305 = vrcp.pop %v1267
    %v1306 = vmul.f32 1.0, %v1305
    %v1307 = vrcp.pop %v1268
    %v1308 = vmul.f32 1.0, %v1307
    %v1309 = vrcp.pop %v1269
    %v1310 = vmul.f32 1.0, %v1309
    %v1311 = vrcp.pop %v1270
    %v1312 = vmul.f32 1.0, %v1311
    %v1313 = vrcp.pop %v1271
    %v1314 = vmul.f32 1.0, %v1313
    %v1315 = vrcp.pop %v1272
    %v1316 = vmul.f32 1.0, %v1315
    %v1317 = vrcp.pop %v1273
    %v1318 = vmul.f32 1.0, %v1317
    %v1319 = vrcp.pop %v1274
    %v1320 = vmul.f32 1.0, %v1319
    %v1321 = vrcp.pop %v1275
    %v1322 = vmul.f32 1.0, %v1321
    %v1323 = vrcp.pop %v1276
    %v1324 = vmul.f32 1.0, %v1323
    %v1325 = vrcp.pop %v1277
    %v1326 = vmul.f32 1.0, %v1325
    %v1327 = vrcp.pop %v1278
    %v1328 = vmul.f32 1.0, %v1327
    %v1329 = vrcp.pop %v1279
    %v1330 = vmul.f32 1.0, %v1329
    %v1331 = vrcp.pop %v1280
    %v1332 = vmul.f32 1.0, %v1331
    %v1333 = vrcp.pop %v1281
    %v1334 = vmul.f32 1.0, %v1333
    %v1335 = vrcp.pop %v1282
    %v1336 = vmul.f32 1.0, %v1335
    %v1337 = vrcp.pop %v1283
    %v1338 = vmul.f32 1.0, %v1337
    %v1339 = vrcp.pop %v1284
    %v1340 = vmul.f32 1.0, %v1339
    %v1341 = vrcp.pop %v1285
    %v1342 = vmul.f32 1.0, %v1341
    %v1343 = vrcp.pop %v1286
    %v1344 = vmul.f32 1.0, %v1343
    %v1345 = vrcp.pop %v1287
    %v1346 = vmul.f32 1.0, %v1345
    %v1347 = vrcp.pop %v1288
    %v1348 = vmul.f32 1.0, %v1347
    %v1349 = vrcp.pop %v1289
    %v1350 = vmul.f32 1.0, %v1349
    %v1351 = vrcp.pop %v1290
    %v1352 = vmul.f32 1.0, %v1351
    %v1353 = vrcp.pop %v1291
    %v1354 = vmul.f32 1.0, %v1353
    %v1355 = vrcp.pop %v1292
    %v1356 = vmul.f32 1.0, %v1355
    %v1357 = vmul.f32 %v1133, %v1294
    %v1358 = vmul.f32 %v1134, %v1296
    %v1359 = vmul.f32 %v1135, %v1298
    %v1360 = vmul.f32 %v1136, %v1300
    %v1361 = vmul.f32 %v1137, %v1302
    %v1362 = vmul.f32 %v1138, %v1304
    %v1363 = vmul.f32 %v1139, %v1306
    %v1364 = vmul.f32 %v1140, %v1308
    %v1365 = vmul.f32 %v1141, %v1310
    %v1366 = vmul.f32 %v1142, %v1312
    %v1367 = vmul.f32 %v1143, %v1314
    %v1368 = vmul.f32 %v1144, %v1316
    %v1369 = vmul.f32 %v1145, %v1318
    %v1370 = vmul.f32 %v1146, %v1320
    %v1371 = vmul.f32 %v1147, %v1322
    %v1372 = vmul.f32 %v1148, %v1324
    %v1373 = vmul.f32 %v1149, %v1326
    %v1374 = vmul.f32 %v1150, %v1328
    %v1375 = vmul.f32 %v1151, %v1330
    %v1376 = vmul.f32 %v1152, %v1332
    %v1377 = vmul.f32 %v1153, %v1334
    %v1378 = vmul.f32 %v1154, %v1336
    %v1379 = vmul.f32 %v1155, %v1338
    %v1380 = vmul.f32 %v1156, %v1340
    %v1381 = vmul.f32 %v1157, %v1342
    %v1382 = vmul.f32 %v1158, %v1344
    %v1383 = vmul.f32 %v1159, %v1346
    %v1384 = vmul.f32 %v1160, %v1348
    %v1385 = vmul.f32 %v1161, %v1350
    %v1386 = vmul.f32 %v1162, %v1352
    %v1387 = vmul.f32 %v1163, %v1354
    %v1388 = vmul.f32 %v1164, %v1356
    %v1389 = vpack.c.bf16 %v1358, %v1357
    %v1390 = vpack.c.bf16 %v1360, %v1359
    %v1391 = vpack.c.bf16 %v1362, %v1361
    %v1392 = vpack.c.bf16 %v1364, %v1363
    %v1393 = vpack.c.bf16 %v1366, %v1365
    %v1394 = vpack.c.bf16 %v1368, %v1367
    %v1395 = vpack.c.bf16 %v1370, %v1369
    %v1396 = vpack.c.bf16 %v1372, %v1371
    %v1397 = vpack.c.bf16 %v1374, %v1373
    %v1398 = vpack.c.bf16 %v1376, %v1375
    %v1399 = vpack.c.bf16 %v1378, %v1377
    %v1400 = vpack.c.bf16 %v1380, %v1379
    %v1401 = vpack.c.bf16 %v1382, %v1381
    %v1402 = vpack.c.bf16 %v1384, %v1383
    %v1403 = vpack.c.bf16 %v1386, %v1385
    %v1404 = vpack.c.bf16 %v1388, %v1387
    %v1405 = vld [vmem:[%s4] sm:$0xf]
    %v1406 = vld [vmem:[%s4 + $0x4] sm:$0xf]
    %v1407 = vld [vmem:[%s4 + $0x8] sm:$0xf]
    %v1408 = vld [vmem:[%s4 + $0xc] sm:$0xf]
    %v1409 = vld [vmem:[%s5] sm:$0x1]
    %v1411 = vlaneseq
    %v1412 = vshrl.u32 %v1411, 7
    %v1413 = vsub.s32 0, %v1412
    %v1414 = vrot.slane %v1409, %v1413
    %v1420 = vunpack.c.l.b16 %v1405
    %v1421 = vunpack.c.l.b16 %v1406
    %v1422 = vunpack.c.l.b16 %v1407
    %v1423 = vunpack.c.l.b16 %v1408
    %v1424 = vpack.c.b16 %v1421, %v1420
    %v1425 = vpack.c.b16 %v1423, %v1422
    %vm1428 = vcmask 261120
    %v1430 = vsel %vm1428, %v1389, 0
    %v1433 = vsel %vm1428, %v1390, 0
    %v1436 = vsel %vm1428, %v1391, 0
    %v1439 = vsel %vm1428, %v1392, 0
    %v1442 = vsel %vm1428, %v1393, 0
    %v1445 = vsel %vm1428, %v1394, 0
    %v1448 = vsel %vm1428, %v1395, 0
    %v1451 = vsel %vm1428, %v1396, 0
    %v1454 = vsel %vm1428, %v1397, 0
    %v1457 = vsel %vm1428, %v1398, 0
    %v1460 = vsel %vm1428, %v1399, 0
    %v1463 = vsel %vm1428, %v1400, 0
    %v1466 = vsel %vm1428, %v1401, 0
    %v1469 = vsel %vm1428, %v1402, 0
    %v1472 = vsel %vm1428, %v1403, 0
    %v1475 = vsel %vm1428, %v1404, 0
    %1477 = vmatprep.subr.bf16.mxu0 0
    %1478 = vmatpush1.bf16.msra.mxu0 0
    %1479 = vmatprep.subr.bf16.mxu0 0
    %1480 = vmatpush1.bf16.msra.mxu0 0
    %1481 = vmatprep.subr.bf16.mxu0 0
    %1482 = vmatpush1.bf16.msra.mxu0 0
    %1483 = vmatprep.subr.bf16.mxu0 0
    %1484 = vmatpush1.bf16.msra.mxu0 0
    %1485 = vmatprep.subr.bf16.mxu0 0
    %1486 = vmatpush1.bf16.msra.mxu0 0
    %1487 = vmatprep.subr.bf16.mxu0 0
    %1488 = vmatpush1.bf16.msra.mxu0 0
    %1489 = vmatprep.subr.bf16.mxu0 0
    %1490 = vmatpush1.bf16.msra.mxu0 %v1425
    %1491 = vmatprep.subr.bf16.mxu0 0
    %1492 = vmatpush1.bf16.msra.mxu0 %v1424
    %1493 = vmatprep.subr.bf16.mxu0 0
    %1494 = vmatpush2.bf16.msra.mxu0 0
    %1495 = vmatprep.subr.bf16.mxu0 0
    %1496 = vmatpush2.bf16.msra.mxu0 0
    %1497 = vmatprep.subr.bf16.mxu0 0
    %1498 = vmatpush2.bf16.msra.mxu0 0
    %1499 = vmatprep.subr.bf16.mxu0 0
    %1500 = vmatpush2.bf16.msra.mxu0 0
    %1501 = vmatprep.subr.bf16.mxu0 0
    %1502 = vmatpush2.bf16.msra.mxu0 0
    %1503 = vmatprep.subr.bf16.mxu0 0
    %1504 = vmatpush2.bf16.msra.mxu0 0
    %1505 = vmatprep.subr.bf16.mxu0 0
    %1506 = vmatpush2.bf16.msra.mxu0 0
    %1507 = vmatprep.subr.bf16.mxu0 0
    %1508 = vmatpush2.bf16.msra.mxu0 0
    %1509 = vmatprep.mubr.bf16.mxu0 0
    %1510 = vmatmul.mubr.bf16.gmra.mxu0 %v1430
    %v1511 = vpop.f32.mrf.mxu0
    %v1512 = vadd.f32 %v1414, %v1511
    %v1513 = vpop.f32.mrf.mxu0
    %v1514 = vpop.f32.mrf.mxu0
    %v1515 = vadd.f32 %v1414, %v1514
    %v1516 = vpop.f32.mrf.mxu0
    %1517 = vmatprep.mubr.bf16.mxu0 0
    %1518 = vmatmul.mubr.bf16.gmra.mxu0 %v1433
    %v1519 = vpop.f32.mrf.mxu0
    %v1520 = vadd.f32 %v1414, %v1519
    %v1521 = vpop.f32.mrf.mxu0
    %v1522 = vpop.f32.mrf.mxu0
    %v1523 = vadd.f32 %v1414, %v1522
    %v1524 = vpop.f32.mrf.mxu0
    %1525 = vmatprep.mubr.bf16.mxu0 0
    %1526 = vmatmul.mubr.bf16.gmra.mxu0 %v1436
    %v1527 = vpop.f32.mrf.mxu0
    %v1528 = vadd.f32 %v1414, %v1527
    %v1529 = vpop.f32.mrf.mxu0
    %v1530 = vpop.f32.mrf.mxu0
    %v1531 = vadd.f32 %v1414, %v1530
    %v1532 = vpop.f32.mrf.mxu0
    %1533 = vmatprep.mubr.bf16.mxu0 0
    %1534 = vmatmul.mubr.bf16.gmra.mxu0 %v1439
    %v1535 = vpop.f32.mrf.mxu0
    %v1536 = vadd.f32 %v1414, %v1535
    %v1537 = vpop.f32.mrf.mxu0
    %v1538 = vpop.f32.mrf.mxu0
    %v1539 = vadd.f32 %v1414, %v1538
    %v1540 = vpop.f32.mrf.mxu0
    %1541 = vmatprep.mubr.bf16.mxu0 0
    %1542 = vmatmul.mubr.bf16.gmra.mxu0 %v1442
    %v1543 = vpop.f32.mrf.mxu0
    %v1544 = vadd.f32 %v1414, %v1543
    %v1545 = vpop.f32.mrf.mxu0
    %v1546 = vpop.f32.mrf.mxu0
    %v1547 = vadd.f32 %v1414, %v1546
    %v1548 = vpop.f32.mrf.mxu0
    %1549 = vmatprep.mubr.bf16.mxu0 0
    %1550 = vmatmul.mubr.bf16.gmra.mxu0 %v1445
    %v1551 = vpop.f32.mrf.mxu0
    %v1552 = vadd.f32 %v1414, %v1551
    %v1553 = vpop.f32.mrf.mxu0
    %v1554 = vpop.f32.mrf.mxu0
    %v1555 = vadd.f32 %v1414, %v1554
    %v1556 = vpop.f32.mrf.mxu0
    %1557 = vmatprep.mubr.bf16.mxu0 0
    %1558 = vmatmul.mubr.bf16.gmra.mxu0 %v1448
    %v1559 = vpop.f32.mrf.mxu0
    %v1560 = vadd.f32 %v1414, %v1559
    %v1561 = vpop.f32.mrf.mxu0
    %v1562 = vpop.f32.mrf.mxu0
    %v1563 = vadd.f32 %v1414, %v1562
    %v1564 = vpop.f32.mrf.mxu0
    %1565 = vmatprep.mubr.bf16.mxu0 0
    %1566 = vmatmul.mubr.bf16.gmra.mxu0 %v1451
    %v1567 = vpop.f32.mrf.mxu0
    %v1568 = vadd.f32 %v1414, %v1567
    %v1569 = vpop.f32.mrf.mxu0
    %v1570 = vpop.f32.mrf.mxu0
    %v1571 = vadd.f32 %v1414, %v1570
    %v1572 = vpop.f32.mrf.mxu0
    %1573 = vmatprep.mubr.bf16.mxu0 0
    %1574 = vmatmul.mubr.bf16.gmra.mxu0 %v1454
    %v1575 = vpop.f32.mrf.mxu0
    %v1576 = vadd.f32 %v1414, %v1575
    %v1577 = vpop.f32.mrf.mxu0
    %v1578 = vpop.f32.mrf.mxu0
    %v1579 = vadd.f32 %v1414, %v1578
    %v1580 = vpop.f32.mrf.mxu0
    %1581 = vmatprep.mubr.bf16.mxu0 0
    %1582 = vmatmul.mubr.bf16.gmra.mxu0 %v1457
    %v1583 = vpop.f32.mrf.mxu0
    %v1584 = vadd.f32 %v1414, %v1583
    %v1585 = vpop.f32.mrf.mxu0
    %v1586 = vpop.f32.mrf.mxu0
    %v1587 = vadd.f32 %v1414, %v1586
    %v1588 = vpop.f32.mrf.mxu0
    %1589 = vmatprep.mubr.bf16.mxu0 0
    %1590 = vmatmul.mubr.bf16.gmra.mxu0 %v1460
    %v1591 = vpop.f32.mrf.mxu0
    %v1592 = vadd.f32 %v1414, %v1591
    %v1593 = vpop.f32.mrf.mxu0
    %v1594 = vpop.f32.mrf.mxu0
    %v1595 = vadd.f32 %v1414, %v1594
    %v1596 = vpop.f32.mrf.mxu0
    %1597 = vmatprep.mubr.bf16.mxu0 0
    %1598 = vmatmul.mubr.bf16.gmra.mxu0 %v1463
    %v1599 = vpop.f32.mrf.mxu0
    %v1600 = vadd.f32 %v1414, %v1599
    %v1601 = vpop.f32.mrf.mxu0
    %v1602 = vpop.f32.mrf.mxu0
    %v1603 = vadd.f32 %v1414, %v1602
    %v1604 = vpop.f32.mrf.mxu0
    %1605 = vmatprep.mubr.bf16.mxu0 0
    %1606 = vmatmul.mubr.bf16.gmra.mxu0 %v1466
    %v1607 = vpop.f32.mrf.mxu0
    %v1608 = vadd.f32 %v1414, %v1607
    %v1609 = vpop.f32.mrf.mxu0
    %v1610 = vpop.f32.mrf.mxu0
    %v1611 = vadd.f32 %v1414, %v1610
    %v1612 = vpop.f32.mrf.mxu0
    %1613 = vmatprep.mubr.bf16.mxu0 0
    %1614 = vmatmul.mubr.bf16.gmra.mxu0 %v1469
    %v1615 = vpop.f32.mrf.mxu0
    %v1616 = vadd.f32 %v1414, %v1615
    %v1617 = vpop.f32.mrf.mxu0
    %v1618 = vpop.f32.mrf.mxu0
    %v1619 = vadd.f32 %v1414, %v1618
    %v1620 = vpop.f32.mrf.mxu0
    %1621 = vmatprep.mubr.bf16.mxu0 0
    %1622 = vmatmul.mubr.bf16.gmra.mxu0 %v1472
    %v1623 = vpop.f32.mrf.mxu0
    %v1624 = vadd.f32 %v1414, %v1623
    %v1625 = vpop.f32.mrf.mxu0
    %v1626 = vpop.f32.mrf.mxu0
    %v1627 = vadd.f32 %v1414, %v1626
    %v1628 = vpop.f32.mrf.mxu0
    %1629 = vmatprep.mubr.bf16.mxu0 0
    %1630 = vmatmul.mubr.bf16.gmra.mxu0 %v1475
    %v1631 = vpop.f32.mrf.mxu0
    %v1632 = vadd.f32 %v1414, %v1631
    %v1633 = vpop.f32.mrf.mxu0
    %v1634 = vpop.f32.mrf.mxu0
    %v1635 = vadd.f32 %v1414, %v1634
    %v1636 = vpop.f32.mrf.mxu0
    %1637 = vdwg.mxu0
    %v1638 = vxor.u32 %v1512, 2147483648
    %v1639 = vxor.u32 %v1515, 2147483648
    %v1640 = vxor.u32 %v1520, 2147483648
    %v1641 = vxor.u32 %v1523, 2147483648
    %v1642 = vxor.u32 %v1528, 2147483648
    %v1643 = vxor.u32 %v1531, 2147483648
    %v1644 = vxor.u32 %v1536, 2147483648
    %v1645 = vxor.u32 %v1539, 2147483648
    %v1646 = vxor.u32 %v1544, 2147483648
    %v1647 = vxor.u32 %v1547, 2147483648
    %v1648 = vxor.u32 %v1552, 2147483648
    %v1649 = vxor.u32 %v1555, 2147483648
    %v1650 = vxor.u32 %v1560, 2147483648
    %v1651 = vxor.u32 %v1563, 2147483648
    %v1652 = vxor.u32 %v1568, 2147483648
    %v1653 = vxor.u32 %v1571, 2147483648
    %v1654 = vxor.u32 %v1576, 2147483648
    %v1655 = vxor.u32 %v1579, 2147483648
    %v1656 = vxor.u32 %v1584, 2147483648
    %v1657 = vxor.u32 %v1587, 2147483648
    %v1658 = vxor.u32 %v1592, 2147483648
    %v1659 = vxor.u32 %v1595, 2147483648
    %v1660 = vxor.u32 %v1600, 2147483648
    %v1661 = vxor.u32 %v1603, 2147483648
    %v1662 = vxor.u32 %v1608, 2147483648
    %v1663 = vxor.u32 %v1611, 2147483648
    %v1664 = vxor.u32 %v1616, 2147483648
    %v1665 = vxor.u32 %v1619, 2147483648
    %v1666 = vxor.u32 %v1624, 2147483648
    %v1667 = vxor.u32 %v1627, 2147483648
    %v1668 = vxor.u32 %v1632, 2147483648
    %v1669 = vxor.u32 %v1635, 2147483648
    %v1670 = vmul.f32 %v1638, 1.442695
    %v1671 = vpow.pop %v1670
    %v1672 = vmul.f32 %v1639, 1.442695
    %v1673 = vpow.pop %v1672
    %v1674 = vmul.f32 %v1640, 1.442695
    %v1675 = vpow.pop %v1674
    %v1676 = vmul.f32 %v1641, 1.442695
    %v1677 = vpow.pop %v1676
    %v1678 = vmul.f32 %v1642, 1.442695
    %v1679 = vpow.pop %v1678
    %v1680 = vmul.f32 %v1643, 1.442695
    %v1681 = vpow.pop %v1680
    %v1682 = vmul.f32 %v1644, 1.442695
    %v1683 = vpow.pop %v1682
    %v1684 = vmul.f32 %v1645, 1.442695
    %v1685 = vpow.pop %v1684
    %v1686 = vmul.f32 %v1646, 1.442695
    %v1687 = vpow.pop %v1686
    %v1688 = vmul.f32 %v1647, 1.442695
    %v1689 = vpow.pop %v1688
    %v1690 = vmul.f32 %v1648, 1.442695
    %v1691 = vpow.pop %v1690
    %v1692 = vmul.f32 %v1649, 1.442695
    %v1693 = vpow.pop %v1692
    %v1694 = vmul.f32 %v1650, 1.442695
    %v1695 = vpow.pop %v1694
    %v1696 = vmul.f32 %v1651, 1.442695
    %v1697 = vpow.pop %v1696
    %v1698 = vmul.f32 %v1652, 1.442695
    %v1699 = vpow.pop %v1698
    %v1700 = vmul.f32 %v1653, 1.442695
    %v1701 = vpow.pop %v1700
    %v1702 = vmul.f32 %v1654, 1.442695
    %v1703 = vpow.pop %v1702
    %v1704 = vmul.f32 %v1655, 1.442695
    %v1705 = vpow.pop %v1704
    %v1706 = vmul.f32 %v1656, 1.442695
    %v1707 = vpow.pop %v1706
    %v1708 = vmul.f32 %v1657, 1.442695
    %v1709 = vpow.pop %v1708
    %v1710 = vmul.f32 %v1658, 1.442695
    %v1711 = vpow.pop %v1710
    %v1712 = vmul.f32 %v1659, 1.442695
    %v1713 = vpow.pop %v1712
    %v1714 = vmul.f32 %v1660, 1.442695
    %v1715 = vpow.pop %v1714
    %v1716 = vmul.f32 %v1661, 1.442695
    %v1717 = vpow.pop %v1716
    %v1718 = vmul.f32 %v1662, 1.442695
    %v1719 = vpow.pop %v1718
    %v1720 = vmul.f32 %v1663, 1.442695
    %v1721 = vpow.pop %v1720
    %v1722 = vmul.f32 %v1664, 1.442695
    %v1723 = vpow.pop %v1722
    %v1724 = vmul.f32 %v1665, 1.442695
    %v1725 = vpow.pop %v1724
    %v1726 = vmul.f32 %v1666, 1.442695
    %v1727 = vpow.pop %v1726
    %v1728 = vmul.f32 %v1667, 1.442695
    %v1729 = vpow.pop %v1728
    %v1730 = vmul.f32 %v1668, 1.442695
    %v1731 = vpow.pop %v1730
    %v1732 = vmul.f32 %v1669, 1.442695
    %v1733 = vpow.pop %v1732
    %v1734 = vadd.f32 %v1671, 1.0
    %v1735 = vadd.f32 %v1673, 1.0
    %v1736 = vadd.f32 %v1675, 1.0
    %v1737 = vadd.f32 %v1677, 1.0
    %v1738 = vadd.f32 %v1679, 1.0
    %v1739 = vadd.f32 %v1681, 1.0
    %v1740 = vadd.f32 %v1683, 1.0
    %v1741 = vadd.f32 %v1685, 1.0
    %v1742 = vadd.f32 %v1687, 1.0
    %v1743 = vadd.f32 %v1689, 1.0
    %v1744 = vadd.f32 %v1691, 1.0
    %v1745 = vadd.f32 %v1693, 1.0
    %v1746 = vadd.f32 %v1695, 1.0
    %v1747 = vadd.f32 %v1697, 1.0
    %v1748 = vadd.f32 %v1699, 1.0
    %v1749 = vadd.f32 %v1701, 1.0
    %v1750 = vadd.f32 %v1703, 1.0
    %v1751 = vadd.f32 %v1705, 1.0
    %v1752 = vadd.f32 %v1707, 1.0
    %v1753 = vadd.f32 %v1709, 1.0
    %v1754 = vadd.f32 %v1711, 1.0
    %v1755 = vadd.f32 %v1713, 1.0
    %v1756 = vadd.f32 %v1715, 1.0
    %v1757 = vadd.f32 %v1717, 1.0
    %v1758 = vadd.f32 %v1719, 1.0
    %v1759 = vadd.f32 %v1721, 1.0
    %v1760 = vadd.f32 %v1723, 1.0
    %v1761 = vadd.f32 %v1725, 1.0
    %v1762 = vadd.f32 %v1727, 1.0
    %v1763 = vadd.f32 %v1729, 1.0
    %v1764 = vadd.f32 %v1731, 1.0
    %v1765 = vadd.f32 %v1733, 1.0
    %v1766 = vrcp.pop %v1734
    %v1767 = vmul.f32 1.0, %v1766
    %v1768 = vrcp.pop %v1735
    %v1769 = vmul.f32 1.0, %v1768
    %v1770 = vrcp.pop %v1736
    %v1771 = vmul.f32 1.0, %v1770
    %v1772 = vrcp.pop %v1737
    %v1773 = vmul.f32 1.0, %v1772
    %v1774 = vrcp.pop %v1738
    %v1775 = vmul.f32 1.0, %v1774
    %v1776 = vrcp.pop %v1739
    %v1777 = vmul.f32 1.0, %v1776
    %v1778 = vrcp.pop %v1740
    %v1779 = vmul.f32 1.0, %v1778
    %v1780 = vrcp.pop %v1741
    %v1781 = vmul.f32 1.0, %v1780
    %v1782 = vrcp.pop %v1742
    %v1783 = vmul.f32 1.0, %v1782
    %v1784 = vrcp.pop %v1743
    %v1785 = vmul.f32 1.0, %v1784
    %v1786 = vrcp.pop %v1744
    %v1787 = vmul.f32 1.0, %v1786
    %v1788 = vrcp.pop %v1745
    %v1789 = vmul.f32 1.0, %v1788
    %v1790 = vrcp.pop %v1746
    %v1791 = vmul.f32 1.0, %v1790
    %v1792 = vrcp.pop %v1747
    %v1793 = vmul.f32 1.0, %v1792
    %v1794 = vrcp.pop %v1748
    %v1795 = vmul.f32 1.0, %v1794
    %v1796 = vrcp.pop %v1749
    %v1797 = vmul.f32 1.0, %v1796
    %v1798 = vrcp.pop %v1750
    %v1799 = vmul.f32 1.0, %v1798
    %v1800 = vrcp.pop %v1751
    %v1801 = vmul.f32 1.0, %v1800
    %v1802 = vrcp.pop %v1752
    %v1803 = vmul.f32 1.0, %v1802
    %v1804 = vrcp.pop %v1753
    %v1805 = vmul.f32 1.0, %v1804
    %v1806 = vrcp.pop %v1754
    %v1807 = vmul.f32 1.0, %v1806
    %v1808 = vrcp.pop %v1755
    %v1809 = vmul.f32 1.0, %v1808
    %v1810 = vrcp.pop %v1756
    %v1811 = vmul.f32 1.0, %v1810
    %v1812 = vrcp.pop %v1757
    %v1813 = vmul.f32 1.0, %v1812
    %v1814 = vrcp.pop %v1758
    %v1815 = vmul.f32 1.0, %v1814
    %v1816 = vrcp.pop %v1759
    %v1817 = vmul.f32 1.0, %v1816
    %v1818 = vrcp.pop %v1760
    %v1819 = vmul.f32 1.0, %v1818
    %v1820 = vrcp.pop %v1761
    %v1821 = vmul.f32 1.0, %v1820
    %v1822 = vrcp.pop %v1762
    %v1823 = vmul.f32 1.0, %v1822
    %v1824 = vrcp.pop %v1763
    %v1825 = vmul.f32 1.0, %v1824
    %v1826 = vrcp.pop %v1764
    %v1827 = vmul.f32 1.0, %v1826
    %v1828 = vrcp.pop %v1765
    %v1829 = vmul.f32 1.0, %v1828
    %v1830 = vmul.f32 %v1512, %v1767
    %v1831 = vmul.f32 %v1515, %v1769
    %v1832 = vmul.f32 %v1520, %v1771
    %v1833 = vmul.f32 %v1523, %v1773
    %v1834 = vmul.f32 %v1528, %v1775
    %v1835 = vmul.f32 %v1531, %v1777
    %v1836 = vmul.f32 %v1536, %v1779
    %v1837 = vmul.f32 %v1539, %v1781
    %v1838 = vmul.f32 %v1544, %v1783
    %v1839 = vmul.f32 %v1547, %v1785
    %v1840 = vmul.f32 %v1552, %v1787
    %v1841 = vmul.f32 %v1555, %v1789
    %v1842 = vmul.f32 %v1560, %v1791
    %v1843 = vmul.f32 %v1563, %v1793
    %v1844 = vmul.f32 %v1568, %v1795
    %v1845 = vmul.f32 %v1571, %v1797
    %v1846 = vmul.f32 %v1576, %v1799
    %v1847 = vmul.f32 %v1579, %v1801
    %v1848 = vmul.f32 %v1584, %v1803
    %v1849 = vmul.f32 %v1587, %v1805
    %v1850 = vmul.f32 %v1592, %v1807
    %v1851 = vmul.f32 %v1595, %v1809
    %v1852 = vmul.f32 %v1600, %v1811
    %v1853 = vmul.f32 %v1603, %v1813
    %v1854 = vmul.f32 %v1608, %v1815
    %v1855 = vmul.f32 %v1611, %v1817
    %v1856 = vmul.f32 %v1616, %v1819
    %v1857 = vmul.f32 %v1619, %v1821
    %v1858 = vmul.f32 %v1624, %v1823
    %v1859 = vmul.f32 %v1627, %v1825
    %v1860 = vmul.f32 %v1632, %v1827
    %v1861 = vmul.f32 %v1635, %v1829
    %v1862 = vpack.c.bf16 %v1831, %v1830
    %v1863 = vpack.c.bf16 %v1833, %v1832
    %v1864 = vpack.c.bf16 %v1835, %v1834
    %v1865 = vpack.c.bf16 %v1837, %v1836
    %v1866 = vpack.c.bf16 %v1839, %v1838
    %v1867 = vpack.c.bf16 %v1841, %v1840
    %v1868 = vpack.c.bf16 %v1843, %v1842
    %v1869 = vpack.c.bf16 %v1845, %v1844
    %v1870 = vpack.c.bf16 %v1847, %v1846
    %v1871 = vpack.c.bf16 %v1849, %v1848
    %v1872 = vpack.c.bf16 %v1851, %v1850
    %v1873 = vpack.c.bf16 %v1853, %v1852
    %v1874 = vpack.c.bf16 %v1855, %v1854
    %v1875 = vpack.c.bf16 %v1857, %v1856
    %v1876 = vpack.c.bf16 %v1859, %v1858
    %v1877 = vpack.c.bf16 %v1861, %v1860
    %v1878 = vld [vmem:[%s6] sm:$0xf]
    %v1879 = vld [vmem:[%s6 + $0x4] sm:$0xf]
    %v1880 = vld [vmem:[%s6 + $0x8] sm:$0xf]
    %v1881 = vld [vmem:[%s6 + $0xc] sm:$0xf]
    %v1886 = vunpack.c.l.b16 %v1878
    %v1887 = vunpack.c.l.b16 %v1879
    %v1888 = vunpack.c.l.b16 %v1880
    %v1889 = vunpack.c.l.b16 %v1881
    %v1890 = vpack.c.b16 %v1887, %v1886
    %v1891 = vpack.c.b16 %v1889, %v1888
    %v1895 = vsel %vm1428, %v1862, 0
    %v1898 = vsel %vm1428, %v1863, 0
    %v1901 = vsel %vm1428, %v1864, 0
    %v1904 = vsel %vm1428, %v1865, 0
    %v1907 = vsel %vm1428, %v1866, 0
    %v1910 = vsel %vm1428, %v1867, 0
    %v1913 = vsel %vm1428, %v1868, 0
    %v1916 = vsel %vm1428, %v1869, 0
    %v1919 = vsel %vm1428, %v1870, 0
    %v1922 = vsel %vm1428, %v1871, 0
    %v1925 = vsel %vm1428, %v1872, 0
    %v1928 = vsel %vm1428, %v1873, 0
    %v1931 = vsel %vm1428, %v1874, 0
    %v1934 = vsel %vm1428, %v1875, 0
    %v1937 = vsel %vm1428, %v1876, 0
    %v1940 = vsel %vm1428, %v1877, 0
    %1942 = vmatprep.subr.bf16.mxu0 0
    %1943 = vmatpush1.bf16.msra.mxu0 0
    %1944 = vmatprep.subr.bf16.mxu0 0
    %1945 = vmatpush1.bf16.msra.mxu0 0
    %1946 = vmatprep.subr.bf16.mxu0 0
    %1947 = vmatpush1.bf16.msra.mxu0 0
    %1948 = vmatprep.subr.bf16.mxu0 0
    %1949 = vmatpush1.bf16.msra.mxu0 0
    %1950 = vmatprep.subr.bf16.mxu0 0
    %1951 = vmatpush1.bf16.msra.mxu0 0
    %1952 = vmatprep.subr.bf16.mxu0 0
    %1953 = vmatpush1.bf16.msra.mxu0 0
    %1954 = vmatprep.subr.bf16.mxu0 0
    %1955 = vmatpush1.bf16.msra.mxu0 %v1891
    %1956 = vmatprep.subr.bf16.mxu0 0
    %1957 = vmatpush1.bf16.msra.mxu0 %v1890
    %1958 = vmatprep.subr.bf16.mxu0 0
    %1959 = vmatpush2.bf16.msra.mxu0 0
    %1960 = vmatprep.subr.bf16.mxu0 0
    %1961 = vmatpush2.bf16.msra.mxu0 0
    %1962 = vmatprep.subr.bf16.mxu0 0
    %1963 = vmatpush2.bf16.msra.mxu0 0
    %1964 = vmatprep.subr.bf16.mxu0 0
    %1965 = vmatpush2.bf16.msra.mxu0 0
    %1966 = vmatprep.subr.bf16.mxu0 0
    %1967 = vmatpush2.bf16.msra.mxu0 0
    %1968 = vmatprep.subr.bf16.mxu0 0
    %1969 = vmatpush2.bf16.msra.mxu0 0
    %1970 = vmatprep.subr.bf16.mxu0 0
    %1971 = vmatpush2.bf16.msra.mxu0 0
    %1972 = vmatprep.subr.bf16.mxu0 0
    %1973 = vmatpush2.bf16.msra.mxu0 0
    %1974 = vmatprep.mubr.bf16.mxu0 0
    %1975 = vmatmul.mubr.bf16.gmra.mxu0 %v1895
    %v1976 = vpop.f32.mrf.mxu0
    %v1977 = vadd.f32 0.0, %v1976
    %v1978 = vpop.f32.mrf.mxu0
    %v1979 = vpop.f32.mrf.mxu0
    %v1980 = vadd.f32 0.0, %v1979
    %v1981 = vpop.f32.mrf.mxu0
    %1982 = vmatprep.mubr.bf16.mxu0 0
    %1983 = vmatmul.mubr.bf16.gmra.mxu0 %v1898
    %v1984 = vpop.f32.mrf.mxu0
    %v1985 = vadd.f32 0.0, %v1984
    %v1986 = vpop.f32.mrf.mxu0
    %v1987 = vpop.f32.mrf.mxu0
    %v1988 = vadd.f32 0.0, %v1987
    %v1989 = vpop.f32.mrf.mxu0
    %1990 = vmatprep.mubr.bf16.mxu0 0
    %1991 = vmatmul.mubr.bf16.gmra.mxu0 %v1901
    %v1992 = vpop.f32.mrf.mxu0
    %v1993 = vadd.f32 0.0, %v1992
    %v1994 = vpop.f32.mrf.mxu0
    %v1995 = vpop.f32.mrf.mxu0
    %v1996 = vadd.f32 0.0, %v1995
    %v1997 = vpop.f32.mrf.mxu0
    %1998 = vmatprep.mubr.bf16.mxu0 0
    %1999 = vmatmul.mubr.bf16.gmra.mxu0 %v1904
    %v2000 = vpop.f32.mrf.mxu0
    %v2001 = vadd.f32 0.0, %v2000
    %v2002 = vpop.f32.mrf.mxu0
    %v2003 = vpop.f32.mrf.mxu0
    %v2004 = vadd.f32 0.0, %v2003
    %v2005 = vpop.f32.mrf.mxu0
    %2006 = vmatprep.mubr.bf16.mxu0 0
    %2007 = vmatmul.mubr.bf16.gmra.mxu0 %v1907
    %v2008 = vpop.f32.mrf.mxu0
    %v2009 = vadd.f32 0.0, %v2008
    %v2010 = vpop.f32.mrf.mxu0
    %v2011 = vpop.f32.mrf.mxu0
    %v2012 = vadd.f32 0.0, %v2011
    %v2013 = vpop.f32.mrf.mxu0
    %2014 = vmatprep.mubr.bf16.mxu0 0
    %2015 = vmatmul.mubr.bf16.gmra.mxu0 %v1910
    %v2016 = vpop.f32.mrf.mxu0
    %v2017 = vadd.f32 0.0, %v2016
    %v2018 = vpop.f32.mrf.mxu0
    %v2019 = vpop.f32.mrf.mxu0
    %v2020 = vadd.f32 0.0, %v2019
    %v2021 = vpop.f32.mrf.mxu0
    %2022 = vmatprep.mubr.bf16.mxu0 0
    %2023 = vmatmul.mubr.bf16.gmra.mxu0 %v1913
    %v2024 = vpop.f32.mrf.mxu0
    %v2025 = vadd.f32 0.0, %v2024
    %v2026 = vpop.f32.mrf.mxu0
    %v2027 = vpop.f32.mrf.mxu0
    %v2028 = vadd.f32 0.0, %v2027
    %v2029 = vpop.f32.mrf.mxu0
    %2030 = vmatprep.mubr.bf16.mxu0 0
    %2031 = vmatmul.mubr.bf16.gmra.mxu0 %v1916
    %v2032 = vpop.f32.mrf.mxu0
    %v2033 = vadd.f32 0.0, %v2032
    %v2034 = vpop.f32.mrf.mxu0
    %v2035 = vpop.f32.mrf.mxu0
    %v2036 = vadd.f32 0.0, %v2035
    %v2037 = vpop.f32.mrf.mxu0
    %2038 = vmatprep.mubr.bf16.mxu0 0
    %2039 = vmatmul.mubr.bf16.gmra.mxu0 %v1919
    %v2040 = vpop.f32.mrf.mxu0
    %v2041 = vadd.f32 0.0, %v2040
    %v2042 = vpop.f32.mrf.mxu0
    %v2043 = vpop.f32.mrf.mxu0
    %v2044 = vadd.f32 0.0, %v2043
    %v2045 = vpop.f32.mrf.mxu0
    %2046 = vmatprep.mubr.bf16.mxu0 0
    %2047 = vmatmul.mubr.bf16.gmra.mxu0 %v1922
    %v2048 = vpop.f32.mrf.mxu0
    %v2049 = vadd.f32 0.0, %v2048
    %v2050 = vpop.f32.mrf.mxu0
    %v2051 = vpop.f32.mrf.mxu0
    %v2052 = vadd.f32 0.0, %v2051
    %v2053 = vpop.f32.mrf.mxu0
    %2054 = vmatprep.mubr.bf16.mxu0 0
    %2055 = vmatmul.mubr.bf16.gmra.mxu0 %v1925
    %v2056 = vpop.f32.mrf.mxu0
    %v2057 = vadd.f32 0.0, %v2056
    %v2058 = vpop.f32.mrf.mxu0
    %v2059 = vpop.f32.mrf.mxu0
    %v2060 = vadd.f32 0.0, %v2059
    %v2061 = vpop.f32.mrf.mxu0
    %2062 = vmatprep.mubr.bf16.mxu0 0
    %2063 = vmatmul.mubr.bf16.gmra.mxu0 %v1928
    %v2064 = vpop.f32.mrf.mxu0
    %v2065 = vadd.f32 0.0, %v2064
    %v2066 = vpop.f32.mrf.mxu0
    %v2067 = vpop.f32.mrf.mxu0
    %v2068 = vadd.f32 0.0, %v2067
    %v2069 = vpop.f32.mrf.mxu0
    %2070 = vmatprep.mubr.bf16.mxu0 0
    %2071 = vmatmul.mubr.bf16.gmra.mxu0 %v1931
    %v2072 = vpop.f32.mrf.mxu0
    %v2073 = vadd.f32 0.0, %v2072
    %v2074 = vpop.f32.mrf.mxu0
    %v2075 = vpop.f32.mrf.mxu0
    %v2076 = vadd.f32 0.0, %v2075
    %v2077 = vpop.f32.mrf.mxu0
    %2078 = vmatprep.mubr.bf16.mxu0 0
    %2079 = vmatmul.mubr.bf16.gmra.mxu0 %v1934
    %v2080 = vpop.f32.mrf.mxu0
    %v2081 = vadd.f32 0.0, %v2080
    %v2082 = vpop.f32.mrf.mxu0
    %v2083 = vpop.f32.mrf.mxu0
    %v2084 = vadd.f32 0.0, %v2083
    %v2085 = vpop.f32.mrf.mxu0
    %2086 = vmatprep.mubr.bf16.mxu0 0
    %2087 = vmatmul.mubr.bf16.gmra.mxu0 %v1937
    %v2088 = vpop.f32.mrf.mxu0
    %v2089 = vadd.f32 0.0, %v2088
    %v2090 = vpop.f32.mrf.mxu0
    %v2091 = vpop.f32.mrf.mxu0
    %v2092 = vadd.f32 0.0, %v2091
    %v2093 = vpop.f32.mrf.mxu0
    %2094 = vmatprep.mubr.bf16.mxu0 0
    %2095 = vmatmul.mubr.bf16.gmra.mxu0 %v1940
    %v2096 = vpop.f32.mrf.mxu0
    %v2097 = vadd.f32 0.0, %v2096
    %v2098 = vpop.f32.mrf.mxu0
    %v2099 = vpop.f32.mrf.mxu0
    %v2100 = vadd.f32 0.0, %v2099
    %v2101 = vpop.f32.mrf.mxu0
    %2102 = vdwg.mxu0
    %vm2103 = vcmp.lt.s32.totalorder %v121, 3
    %2105 = vset.pattern.permute.xlu0 0
    %2106 = vperm.xlu0 %2105, %v1977
    %v2107 = vpop.permute.xlu0 %2106
    %2110 = vset.pattern.permute.xlu0 0
    %2111 = vperm.xlu0 %2110, %v1980
    %v2112 = vpop.permute.xlu0 %2111
    %2115 = vset.pattern.permute.xlu0 0
    %2116 = vperm.xlu0 %2115, %v1985
    %v2117 = vpop.permute.xlu0 %2116
    %2120 = vset.pattern.permute.xlu0 0
    %2121 = vperm.xlu0 %2120, %v1988
    %v2122 = vpop.permute.xlu0 %2121
    %2125 = vset.pattern.permute.xlu0 0
    %2126 = vperm.xlu0 %2125, %v1993
    %v2127 = vpop.permute.xlu0 %2126
    %2130 = vset.pattern.permute.xlu0 0
    %2131 = vperm.xlu0 %2130, %v1996
    %v2132 = vpop.permute.xlu0 %2131
    %2135 = vset.pattern.permute.xlu0 0
    %2136 = vperm.xlu0 %2135, %v2001
    %v2137 = vpop.permute.xlu0 %2136
    %2140 = vset.pattern.permute.xlu0 0
    %2141 = vperm.xlu0 %2140, %v2004
    %v2142 = vpop.permute.xlu0 %2141
    %2145 = vset.pattern.permute.xlu0 0
    %2146 = vperm.xlu0 %2145, %v2009
    %v2147 = vpop.permute.xlu0 %2146
    %2150 = vset.pattern.permute.xlu0 0
    %2151 = vperm.xlu0 %2150, %v2012
    %v2152 = vpop.permute.xlu0 %2151
    %2155 = vset.pattern.permute.xlu0 0
    %2156 = vperm.xlu0 %2155, %v2017
    %v2157 = vpop.permute.xlu0 %2156
    %2160 = vset.pattern.permute.xlu0 0
    %2161 = vperm.xlu0 %2160, %v2020
    %v2162 = vpop.permute.xlu0 %2161
    %2165 = vset.pattern.permute.xlu0 0
    %2166 = vperm.xlu0 %2165, %v2025
    %v2167 = vpop.permute.xlu0 %2166
    %2170 = vset.pattern.permute.xlu0 0
    %2171 = vperm.xlu0 %2170, %v2028
    %v2172 = vpop.permute.xlu0 %2171
    %2175 = vset.pattern.permute.xlu0 0
    %2176 = vperm.xlu0 %2175, %v2033
    %v2177 = vpop.permute.xlu0 %2176
    %2180 = vset.pattern.permute.xlu0 0
    %2181 = vperm.xlu0 %2180, %v2036
    %v2182 = vpop.permute.xlu0 %2181
    %2185 = vset.pattern.permute.xlu0 0
    %2186 = vperm.xlu0 %2185, %v2041
    %v2187 = vpop.permute.xlu0 %2186
    %2190 = vset.pattern.permute.xlu0 0
    %2191 = vperm.xlu0 %2190, %v2044
    %v2192 = vpop.permute.xlu0 %2191
    %2195 = vset.pattern.permute.xlu0 0
    %2196 = vperm.xlu0 %2195, %v2049
    %v2197 = vpop.permute.xlu0 %2196
    %2200 = vset.pattern.permute.xlu0 0
    %2201 = vperm.xlu0 %2200, %v2052
    %v2202 = vpop.permute.xlu0 %2201
    %2205 = vset.pattern.permute.xlu0 0
    %2206 = vperm.xlu0 %2205, %v2057
    %v2207 = vpop.permute.xlu0 %2206
    %2210 = vset.pattern.permute.xlu0 0
    %2211 = vperm.xlu0 %2210, %v2060
    %v2212 = vpop.permute.xlu0 %2211
    %2215 = vset.pattern.permute.xlu0 0
    %2216 = vperm.xlu0 %2215, %v2065
    %v2217 = vpop.permute.xlu0 %2216
    %2220 = vset.pattern.permute.xlu0 0
    %2221 = vperm.xlu0 %2220, %v2068
    %v2222 = vpop.permute.xlu0 %2221
    %2225 = vset.pattern.permute.xlu0 0
    %2226 = vperm.xlu0 %2225, %v2073
    %v2227 = vpop.permute.xlu0 %2226
    %2230 = vset.pattern.permute.xlu0 0
    %2231 = vperm.xlu0 %2230, %v2076
    %v2232 = vpop.permute.xlu0 %2231
    %2235 = vset.pattern.permute.xlu0 0
    %2236 = vperm.xlu0 %2235, %v2081
    %v2237 = vpop.permute.xlu0 %2236
    %2240 = vset.pattern.permute.xlu0 0
    %2241 = vperm.xlu0 %2240, %v2084
    %v2242 = vpop.permute.xlu0 %2241
    %2245 = vset.pattern.permute.xlu0 0
    %2246 = vperm.xlu0 %2245, %v2089
    %v2247 = vpop.permute.xlu0 %2246
    %2250 = vset.pattern.permute.xlu0 0
    %2251 = vperm.xlu0 %2250, %v2092
    %v2252 = vpop.permute.xlu0 %2251
    %2255 = vset.pattern.permute.xlu0 0
    %2256 = vperm.xlu0 %2255, %v2097
    %v2257 = vpop.permute.xlu0 %2256
    %2260 = vset.pattern.permute.xlu0 0
    %2261 = vperm.xlu0 %2260, %v2100
    %v2262 = vpop.permute.xlu0 %2261
    %v2264 = vsel %vm2103, %v2107, 1.0
    %v2265 = vsel %vm2103, %v2112, 1.0
    %v2266 = vsel %vm2103, %v2117, 1.0
    %v2267 = vsel %vm2103, %v2122, 1.0
    %v2268 = vsel %vm2103, %v2127, 1.0
    %v2269 = vsel %vm2103, %v2132, 1.0
    %v2270 = vsel %vm2103, %v2137, 1.0
    %v2271 = vsel %vm2103, %v2142, 1.0
    %v2272 = vsel %vm2103, %v2147, 1.0
    %v2273 = vsel %vm2103, %v2152, 1.0
    %v2274 = vsel %vm2103, %v2157, 1.0
    %v2275 = vsel %vm2103, %v2162, 1.0
    %v2276 = vsel %vm2103, %v2167, 1.0
    %v2277 = vsel %vm2103, %v2172, 1.0
    %v2278 = vsel %vm2103, %v2177, 1.0
    %v2279 = vsel %vm2103, %v2182, 1.0
    %v2280 = vsel %vm2103, %v2187, 1.0
    %v2281 = vsel %vm2103, %v2192, 1.0
    %v2282 = vsel %vm2103, %v2197, 1.0
    %v2283 = vsel %vm2103, %v2202, 1.0
    %v2284 = vsel %vm2103, %v2207, 1.0
    %v2285 = vsel %vm2103, %v2212, 1.0
    %v2286 = vsel %vm2103, %v2217, 1.0
    %v2287 = vsel %vm2103, %v2222, 1.0
    %v2288 = vsel %vm2103, %v2227, 1.0
    %v2289 = vsel %vm2103, %v2232, 1.0
    %v2290 = vsel %vm2103, %v2237, 1.0
    %v2291 = vsel %vm2103, %v2242, 1.0
    %v2292 = vsel %vm2103, %v2247, 1.0
    %v2293 = vsel %vm2103, %v2252, 1.0
    %v2294 = vsel %vm2103, %v2257, 1.0
    %v2295 = vsel %vm2103, %v2262, 1.0
    %2328 = vrot.lane.b32.xlu0 %v2264, 2
    %v2329 = vpop.permute.xlu0 %2328
    %2330 = vrot.lane.b32.xlu0 %v2265, 2
    %v2331 = vpop.permute.xlu0 %2330
    %2332 = vrot.lane.b32.xlu0 %v2266, 2
    %v2333 = vpop.permute.xlu0 %2332
    %2334 = vrot.lane.b32.xlu0 %v2267, 2
    %v2335 = vpop.permute.xlu0 %2334
    %2336 = vrot.lane.b32.xlu0 %v2268, 2
    %v2337 = vpop.permute.xlu0 %2336
    %2338 = vrot.lane.b32.xlu0 %v2269, 2
    %v2339 = vpop.permute.xlu0 %2338
    %2340 = vrot.lane.b32.xlu0 %v2270, 2
    %v2341 = vpop.permute.xlu0 %2340
    %2342 = vrot.lane.b32.xlu0 %v2271, 2
    %v2343 = vpop.permute.xlu0 %2342
    %2344 = vrot.lane.b32.xlu0 %v2272, 2
    %v2345 = vpop.permute.xlu0 %2344
    %2346 = vrot.lane.b32.xlu0 %v2273, 2
    %v2347 = vpop.permute.xlu0 %2346
    %2348 = vrot.lane.b32.xlu0 %v2274, 2
    %v2349 = vpop.permute.xlu0 %2348
    %2350 = vrot.lane.b32.xlu0 %v2275, 2
    %v2351 = vpop.permute.xlu0 %2350
    %2352 = vrot.lane.b32.xlu0 %v2276, 2
    %v2353 = vpop.permute.xlu0 %2352
    %2354 = vrot.lane.b32.xlu0 %v2277, 2
    %v2355 = vpop.permute.xlu0 %2354
    %2356 = vrot.lane.b32.xlu0 %v2278, 2
    %v2357 = vpop.permute.xlu0 %2356
    %2358 = vrot.lane.b32.xlu0 %v2279, 2
    %v2359 = vpop.permute.xlu0 %2358
    %2360 = vrot.lane.b32.xlu0 %v2280, 2
    %v2361 = vpop.permute.xlu0 %2360
    %2362 = vrot.lane.b32.xlu0 %v2281, 2
    %v2363 = vpop.permute.xlu0 %2362
    %2364 = vrot.lane.b32.xlu0 %v2282, 2
    %v2365 = vpop.permute.xlu0 %2364
    %2366 = vrot.lane.b32.xlu0 %v2283, 2
    %v2367 = vpop.permute.xlu0 %2366
    %2368 = vrot.lane.b32.xlu0 %v2284, 2
    %v2369 = vpop.permute.xlu0 %2368
    %2370 = vrot.lane.b32.xlu0 %v2285, 2
    %v2371 = vpop.permute.xlu0 %2370
    %2372 = vrot.lane.b32.xlu0 %v2286, 2
    %v2373 = vpop.permute.xlu0 %2372
    %2374 = vrot.lane.b32.xlu0 %v2287, 2
    %v2375 = vpop.permute.xlu0 %2374
    %2376 = vrot.lane.b32.xlu0 %v2288, 2
    %v2377 = vpop.permute.xlu0 %2376
    %2378 = vrot.lane.b32.xlu0 %v2289, 2
    %v2379 = vpop.permute.xlu0 %2378
    %2380 = vrot.lane.b32.xlu0 %v2290, 2
    %v2381 = vpop.permute.xlu0 %2380
    %2382 = vrot.lane.b32.xlu0 %v2291, 2
    %v2383 = vpop.permute.xlu0 %2382
    %2384 = vrot.lane.b32.xlu0 %v2292, 2
    %v2385 = vpop.permute.xlu0 %2384
    %2386 = vrot.lane.b32.xlu0 %v2293, 2
    %v2387 = vpop.permute.xlu0 %2386
    %2388 = vrot.lane.b32.xlu0 %v2294, 2
    %v2389 = vpop.permute.xlu0 %2388
    %2390 = vrot.lane.b32.xlu0 %v2295, 2
    %v2391 = vpop.permute.xlu0 %2390
    %v2424 = vmul.f32 %v56, %v2329
    %v2425 = vmul.f32 %v57, %v2331
    %v2426 = vmul.f32 %v58, %v2333
    %v2427 = vmul.f32 %v59, %v2335
    %v2428 = vmul.f32 %v60, %v2337
    %v2429 = vmul.f32 %v61, %v2339
    %v2430 = vmul.f32 %v62, %v2341
    %v2431 = vmul.f32 %v63, %v2343
    %v2432 = vmul.f32 %v64, %v2345
    %v2433 = vmul.f32 %v65, %v2347
    %v2434 = vmul.f32 %v66, %v2349
    %v2435 = vmul.f32 %v67, %v2351
    %v2436 = vmul.f32 %v68, %v2353
    %v2437 = vmul.f32 %v69, %v2355
    %v2438 = vmul.f32 %v70, %v2357
    %v2439 = vmul.f32 %v71, %v2359
    %v2440 = vmul.f32 %v72, %v2361
    %v2441 = vmul.f32 %v73, %v2363
    %v2442 = vmul.f32 %v74, %v2365
    %v2443 = vmul.f32 %v75, %v2367
    %v2444 = vmul.f32 %v76, %v2369
    %v2445 = vmul.f32 %v77, %v2371
    %v2446 = vmul.f32 %v78, %v2373
    %v2447 = vmul.f32 %v79, %v2375
    %v2448 = vmul.f32 %v80, %v2377
    %v2449 = vmul.f32 %v81, %v2379
    %v2450 = vmul.f32 %v82, %v2381
    %v2451 = vmul.f32 %v83, %v2383
    %v2452 = vmul.f32 %v84, %v2385
    %v2453 = vmul.f32 %v85, %v2387
    %v2454 = vmul.f32 %v86, %v2389
    %v2455 = vmul.f32 %v87, %v2391
    %v2456 = vld [vmem:[#allocation2] sm:$0xf]
    %2489 = vrot.lane.b32.xlu0 %v2424, 126
    %v2490 = vpop.permute.xlu0 %2489
    %2491 = vrot.lane.b32.xlu0 %v2425, 126
    %v2492 = vpop.permute.xlu0 %2491
    %2493 = vrot.lane.b32.xlu0 %v2426, 126
    %v2494 = vpop.permute.xlu0 %2493
    %2495 = vrot.lane.b32.xlu0 %v2427, 126
    %v2496 = vpop.permute.xlu0 %2495
    %2497 = vrot.lane.b32.xlu0 %v2428, 126
    %v2498 = vpop.permute.xlu0 %2497
    %2499 = vrot.lane.b32.xlu0 %v2429, 126
    %v2500 = vpop.permute.xlu0 %2499
    %2501 = vrot.lane.b32.xlu0 %v2430, 126
    %v2502 = vpop.permute.xlu0 %2501
    %2503 = vrot.lane.b32.xlu0 %v2431, 126
    %v2504 = vpop.permute.xlu0 %2503
    %2505 = vrot.lane.b32.xlu0 %v2432, 126
    %v2506 = vpop.permute.xlu0 %2505
    %2507 = vrot.lane.b32.xlu0 %v2433, 126
    %v2508 = vpop.permute.xlu0 %2507
    %2509 = vrot.lane.b32.xlu0 %v2434, 126
    %v2510 = vpop.permute.xlu0 %2509
    %2511 = vrot.lane.b32.xlu0 %v2435, 126
    %v2512 = vpop.permute.xlu0 %2511
    %2513 = vrot.lane.b32.xlu0 %v2436, 126
    %v2514 = vpop.permute.xlu0 %2513
    %2515 = vrot.lane.b32.xlu0 %v2437, 126
    %v2516 = vpop.permute.xlu0 %2515
    %2517 = vrot.lane.b32.xlu0 %v2438, 126
    %v2518 = vpop.permute.xlu0 %2517
    %2519 = vrot.lane.b32.xlu0 %v2439, 126
    %v2520 = vpop.permute.xlu0 %2519
    %2521 = vrot.lane.b32.xlu0 %v2440, 126
    %v2522 = vpop.permute.xlu0 %2521
    %2523 = vrot.lane.b32.xlu0 %v2441, 126
    %v2524 = vpop.permute.xlu0 %2523
    %2525 = vrot.lane.b32.xlu0 %v2442, 126
    %v2526 = vpop.permute.xlu0 %2525
    %2527 = vrot.lane.b32.xlu0 %v2443, 126
    %v2528 = vpop.permute.xlu0 %2527
    %2529 = vrot.lane.b32.xlu0 %v2444, 126
    %v2530 = vpop.permute.xlu0 %2529
    %2531 = vrot.lane.b32.xlu0 %v2445, 126
    %v2532 = vpop.permute.xlu0 %2531
    %2533 = vrot.lane.b32.xlu0 %v2446, 126
    %v2534 = vpop.permute.xlu0 %2533
    %2535 = vrot.lane.b32.xlu0 %v2447, 126
    %v2536 = vpop.permute.xlu0 %2535
    %2537 = vrot.lane.b32.xlu0 %v2448, 126
    %v2538 = vpop.permute.xlu0 %2537
    %2539 = vrot.lane.b32.xlu0 %v2449, 126
    %v2540 = vpop.permute.xlu0 %2539
    %2541 = vrot.lane.b32.xlu0 %v2450, 126
    %v2542 = vpop.permute.xlu0 %2541
    %2543 = vrot.lane.b32.xlu0 %v2451, 126
    %v2544 = vpop.permute.xlu0 %2543
    %2545 = vrot.lane.b32.xlu0 %v2452, 126
    %v2546 = vpop.permute.xlu0 %2545
    %2547 = vrot.lane.b32.xlu0 %v2453, 126
    %v2548 = vpop.permute.xlu0 %2547
    %2549 = vrot.lane.b32.xlu0 %v2454, 126
    %v2550 = vpop.permute.xlu0 %2549
    %2551 = vrot.lane.b32.xlu0 %v2455, 126
    %v2552 = vpop.permute.xlu0 %2551
    %2585 = vxpose.xlu0.b32.start [1/16] %v2490, 128
    %2586 = vxpose.xlu0.b32.cont [2/16] %v2492, 128
    %2587 = vxpose.xlu0.b32.cont [3/16] %v2494, 128
    %2588 = vxpose.xlu0.b32.cont [4/16] %v2496, 128
    %2589 = vxpose.xlu0.b32.cont [5/16] %v2498, 128
    %2590 = vxpose.xlu0.b32.cont [6/16] %v2500, 128
    %2591 = vxpose.xlu0.b32.cont [7/16] %v2502, 128
    %2592 = vxpose.xlu0.b32.cont [8/16] %v2504, 128
    %2593 = vxpose.xlu0.b32.cont [9/16] %v2506, 128
    %2594 = vxpose.xlu0.b32.cont [10/16] %v2508, 128
    %2595 = vxpose.xlu0.b32.cont [11/16] %v2510, 128
    %2596 = vxpose.xlu0.b32.cont [12/16] %v2512, 128
    %2597 = vxpose.xlu0.b32.cont [13/16] %v2514, 128
    %2598 = vxpose.xlu0.b32.cont [14/16] %v2516, 128
    %2599 = vxpose.xlu0.b32.cont [15/16] %v2518, 128
    %2600 = vxpose.xlu0.b32.end [16/16] %v2520, 128
    %v2601 = vpop.trf.xlu0
    %v2602 = vpop.trf.xlu0
    %v2603 = vpop.trf.xlu0
    %v2604 = vpop.trf.xlu0
    %v2605 = vpop.trf.xlu0
    %v2606 = vpop.trf.xlu0
    %v2607 = vpop.trf.xlu0
    %v2608 = vpop.trf.xlu0
    %v2609 = vpop.trf.xlu0
    %v2610 = vpop.trf.xlu0
    %v2611 = vpop.trf.xlu0
    %v2612 = vpop.trf.xlu0
    %v2613 = vpop.trf.xlu0
    %v2614 = vpop.trf.xlu0
    %v2615 = vpop.trf.xlu0
    %v2616 = vpop.trf.xlu0
    %2617 = vxpose.xlu0.b32.start [1/16] %v2522, 128
    %2618 = vxpose.xlu0.b32.cont [2/16] %v2524, 128
    %2619 = vxpose.xlu0.b32.cont [3/16] %v2526, 128
    %2620 = vxpose.xlu0.b32.cont [4/16] %v2528, 128
    %2621 = vxpose.xlu0.b32.cont [5/16] %v2530, 128
    %2622 = vxpose.xlu0.b32.cont [6/16] %v2532, 128
    %2623 = vxpose.xlu0.b32.cont [7/16] %v2534, 128
    %2624 = vxpose.xlu0.b32.cont [8/16] %v2536, 128
    %2625 = vxpose.xlu0.b32.cont [9/16] %v2538, 128
    %2626 = vxpose.xlu0.b32.cont [10/16] %v2540, 128
    %2627 = vxpose.xlu0.b32.cont [11/16] %v2542, 128
    %2628 = vxpose.xlu0.b32.cont [12/16] %v2544, 128
    %2629 = vxpose.xlu0.b32.cont [13/16] %v2546, 128
    %2630 = vxpose.xlu0.b32.cont [14/16] %v2548, 128
    %2631 = vxpose.xlu0.b32.cont [15/16] %v2550, 128
    %2632 = vxpose.xlu0.b32.end [16/16] %v2552, 128
    %v2633 = vpop.trf.xlu0
    %v2634 = vpop.trf.xlu0
    %v2635 = vpop.trf.xlu0
    %v2636 = vpop.trf.xlu0
    %v2637 = vpop.trf.xlu0
    %v2638 = vpop.trf.xlu0
    %v2639 = vpop.trf.xlu0
    %v2640 = vpop.trf.xlu0
    %v2641 = vpop.trf.xlu0
    %v2642 = vpop.trf.xlu0
    %v2643 = vpop.trf.xlu0
    %v2644 = vpop.trf.xlu0
    %v2645 = vpop.trf.xlu0
    %v2646 = vpop.trf.xlu0
    %v2647 = vpop.trf.xlu0
    %v2648 = vpop.trf.xlu0
    %2649 = vmatprep.subr.mxu0 0.0
    %2650 = vmatpush1.msra.mxu0 %v297
    %2651 = vmatprep.subr.mxu0 0.0
    %2652 = vmatpush1.msra.mxu0 %v296
    %2653 = vmatprep.subr.mxu0 0.0
    %2654 = vmatpush1.msra.mxu0 %v295
    %2655 = vmatprep.subr.mxu0 0.0
    %2656 = vmatpush1.msra.mxu0 %v294
    %2657 = vmatprep.subr.mxu0 0.0
    %2658 = vmatpush1.msra.mxu0 %v293
    %2659 = vmatprep.subr.mxu0 0.0
    %2660 = vmatpush1.msra.mxu0 %v292
    %2661 = vmatprep.subr.mxu0 0.0
    %2662 = vmatpush1.msra.mxu0 %v291
    %2663 = vmatprep.subr.mxu0 0.0
    %2664 = vmatpush1.msra.mxu0 %v290
    %2665 = vmatprep.subr.mxu0 0.0
    %2666 = vmatpush1.msra.mxu0 %v289
    %2667 = vmatprep.subr.mxu0 0.0
    %2668 = vmatpush1.msra.mxu0 %v288
    %2669 = vmatprep.subr.mxu0 0.0
    %2670 = vmatpush1.msra.mxu0 %v287
    %2671 = vmatprep.subr.mxu0 0.0
    %2672 = vmatpush1.msra.mxu0 %v286
    %2673 = vmatprep.subr.mxu0 0.0
    %2674 = vmatpush1.msra.mxu0 %v285
    %2675 = vmatprep.subr.mxu0 0.0
    %2676 = vmatpush1.msra.mxu0 %v284
    %2677 = vmatprep.subr.mxu0 0.0
    %2678 = vmatpush1.msra.mxu0 %v283
    %2679 = vmatprep.subr.mxu0 0.0
    %2680 = vmatpush1.msra.mxu0 %v282
    %2681 = vmatprep.subr.mxu0 0.0
    %2682 = vmatpush2.msra.mxu0 %v313
    %2683 = vmatprep.subr.mxu0 0.0
    %2684 = vmatpush2.msra.mxu0 %v312
    %2685 = vmatprep.subr.mxu0 0.0
    %2686 = vmatpush2.msra.mxu0 %v311
    %2687 = vmatprep.subr.mxu0 0.0
    %2688 = vmatpush2.msra.mxu0 %v310
    %2689 = vmatprep.subr.mxu0 0.0
    %2690 = vmatpush2.msra.mxu0 %v309
    %2691 = vmatprep.subr.mxu0 0.0
    %2692 = vmatpush2.msra.mxu0 %v308
    %2693 = vmatprep.subr.mxu0 0.0
    %2694 = vmatpush2.msra.mxu0 %v307
    %2695 = vmatprep.subr.mxu0 0.0
    %2696 = vmatpush2.msra.mxu0 %v306
    %2697 = vmatprep.subr.mxu0 0.0
    %2698 = vmatpush2.msra.mxu0 %v305
    %2699 = vmatprep.subr.mxu0 0.0
    %2700 = vmatpush2.msra.mxu0 %v304
    %2701 = vmatprep.subr.mxu0 0.0
    %2702 = vmatpush2.msra.mxu0 %v303
    %2703 = vmatprep.subr.mxu0 0.0
    %2704 = vmatpush2.msra.mxu0 %v302
    %2705 = vmatprep.subr.mxu0 0.0
    %2706 = vmatpush2.msra.mxu0 %v301
    %2707 = vmatprep.subr.mxu0 0.0
    %2708 = vmatpush2.msra.mxu0 %v300
    %2709 = vmatprep.subr.mxu0 0.0
    %2710 = vmatpush2.msra.mxu0 %v299
    %2711 = vmatprep.subr.mxu0 0.0
    %2712 = vmatpush2.msra.mxu0 %v298
    %2713 = vmatprep.mubr.f32.mxu0 %v2633
    %2714 = vmatmul.mubr.f32.gmra.mxu0 %v2601
    %v2715 = vpop.f32.mrf.mxu0
    %v2716 = vadd.f32 0.0, %v2715
    %v2717 = vpop.f32.mrf.mxu0
    %2718 = vdwg.mxu0
    %v2719 = vadd.f32 %v2456, %v2716
    %vm2720 = vcmask 60416
    %2721 = vst.msk [vmem:[#allocation2] sm:$0xf] %vm2720, %v2719
    // Predicated region
    $region34: #{tpu_custom_call.1} parent=1 // pred_check
      _
    $region35: #{tpu_custom_call.1} parent=1 // pred_check_branch
      %2723 = sbr.rel (0) target = $region37
    $region36: #{tpu_custom_call.1} parent=1 // pred_region
      %s2725 = ssub.s32 64, 64
      %2726 = vsyncadd [#allocation3], %s2725
      %s2728 = sshll.u32 [#allocation2], 4
      %s2729 = int_to_ptr.vmem [resolvable:$true] %s2728
      %2731 = dma.vmem_to_hbm [thread:$0]  %s2729, 64, %s7, [#allocation3]
    $region37: #{tpu_custom_call.1} parent=1 // pred_fallthru
      _
    // Predicated region
    $region38: #{tpu_custom_call.1} parent=1 // pred_check
      _
    $region39: #{tpu_custom_call.1} parent=1 // pred_check_branch
      %2733 = sbr.rel (0) target = $region41
    $region40: #{tpu_custom_call.1} parent=1 // pred_region
      %2734 = dma.done [#allocation3], 64
    $region41: #{tpu_custom_call.1} parent=1 // pred_fallthru
      _
    %2735 = vsyncpa [#allocation3], 1

</llo_original>
